<compile_context>
chip_gen: v5e
topology: v5e:2x2
jax: 0.10.0
libtpu: 0.0.40
codegen_flags: <defaults>
</compile_context>

<pallas_src>
import functools

import jax
import jax.numpy as jnp
from jax.experimental import pallas as pl
from jax.experimental.pallas import tpu as pltpu


def _round_up(x, m):
    return (x + m - 1) // m * m


def _pick_row_tile(h, cap=8):
    for t in range(min(h, cap), 0, -1):
        if h % t == 0:
            return t
    return 1


def _scale_pred_kernel(xp_ref, w1_ref, shift_ref, w2_ref, b2_ref, o_ref):
    """One (batch, row-tile) per grid step.

    xp_ref   : (1, H+3, Wpad, Cin) bf16  zero-padded NHWC input (whole map,
               resident across the row axis; Wpad = round_up(W+2, 8))
    w1_ref   : (9, Cin, Cmid) bf16       3x3 weights, tap-major (dy*3+dx),
               BN scale already folded in
    shift_ref: (1, Cmid) f32             folded BN shift
    w2_ref   : (Cmid, Cout_p) bf16       1x1 weights, zero-padded to Cout_p
    b2_ref   : (1, Cout_p) f32           1x1 bias, zero-padded
    o_ref    : (1, th, W, Cout_p) f32    output row tile (lane-dense Cout_p)
    """
    _, th, W, Cout_p = o_ref.shape
    Wpad, Cin = xp_ref.shape[2], xp_ref.shape[3]
    Cmid = w1_ref.shape[2]
    M = th * Wpad

    r0 = pl.multiple_of(pl.program_id(1) * th, th)

    # 3x3 conv as 9 MXU matmuls over a padded-width row slab.  Only 3 slab
    # loads / reshapes (one per dy); the dx shift is a flattened sublane
    # offset, valid because output columns >= W are discarded below.
    acc = jnp.zeros((M, Cmid), jnp.float32)
    for dy in range(3):
        slab = xp_ref[0, pl.ds(r0 + dy, th + 1), :, :]        # (th+1, Wpad, Cin)
        slab2d = slab.reshape((th + 1) * Wpad, Cin)           # Wpad % 8 == 0
        for dx in range(3):
            acc += jnp.dot(slab2d[dx:dx + M, :], w1_ref[dy * 3 + dx],
                           preferred_element_type=jnp.float32)

    # Drop the padded-width columns, then BN shift + LeakyReLU(0.1) in f32.
    acc = acc.reshape(th, Wpad, Cmid)[:, :W, :].reshape(th * W, Cmid)
    mid = acc + shift_ref[...]
    mid = jnp.where(mid > 0, mid, 0.1 * mid)

    # 1x1 conv: bf16 matmul over channels, f32 accumulate, + bias.
    out = jnp.dot(mid.astype(w2_ref.dtype), w2_ref[...],
                  preferred_element_type=jnp.float32) + b2_ref[...]
    o_ref[...] = out.reshape(1, th, W, Cout_p).astype(o_ref.dtype)


@functools.partial(jax.jit, static_argnames=("num_classes",))
def scale_prediction(x_nchw, params, *, num_classes):
    """Forward pass of ScalePrediction. x_nchw: (B, Cin, H, W) float32."""
    B, Cin, H, W = x_nchw.shape
    Cmid = 2 * Cin
    Cout = 3 * (num_classes + 5)
    Cout_p = _round_up(Cout, 128)          # lane-dense output / MXU-N padding
    Wpad = _round_up(W + 2, 8)             # sublane-aligned padded width
    th = _pick_row_tile(H)
    nrow = H // th

    # NCHW -> NHWC, bf16; pad rows (1 top, 2 bottom: conv pad + 1 slack row)
    # and cols (1 left, Wpad-W-1 right: conv pad + alignment slack).
    x = jnp.transpose(x_nchw, (0, 2, 3, 1)).astype(jnp.bfloat16)
    x_pad = jnp.pad(x, ((0, 0), (1, 2), (1, Wpad - W - 1), (0, 0)))

    # Fold BN (inference) into the conv: scale -> into w1, shift -> added in-kernel.
    eps = 1e-5
    scale = params["bn_gamma"] * jax.lax.rsqrt(params["bn_var"] + eps)   # (Cmid,)
    shift = (params["bn_beta"] - params["bn_mean"] * scale).reshape(1, Cmid)
    # PyTorch (Cmid, Cin, 3, 3) -> tap-major (9, Cin, Cmid), scaled, bf16.
    w1 = jnp.transpose(params["w1"], (2, 3, 1, 0)).reshape(9, Cin, Cmid)
    w1 = (w1 * scale[None, None, :]).astype(jnp.bfloat16)
    # PyTorch (Cout, Cmid, 1, 1) -> (Cmid, Cout), zero-pad N to Cout_p, bf16.
    w2 = jnp.transpose(params["w2"][:, :, 0, 0], (1, 0))
    w2 = jnp.pad(w2, ((0, 0), (0, Cout_p - Cout))).astype(jnp.bfloat16)
    b2 = jnp.pad(params["b2"], (0, Cout_p - Cout)).reshape(1, Cout_p)

    out_nhwc = pl.pallas_call(
        _scale_pred_kernel,
        out_shape=jax.ShapeDtypeStruct((B, H, W, Cout_p), jnp.float32),
        grid_spec=pltpu.PrefetchScalarGridSpec(
            num_scalar_prefetch=0,
            grid=(B, nrow),
            in_specs=[
                # Whole padded map per batch; constant across the row axis so
                # it is DMA'd once per batch.
                pl.BlockSpec((1, H + 3, Wpad, Cin), lambda b, i: (b, 0, 0, 0)),
                pl.BlockSpec((9, Cin, Cmid), lambda b, i: (0, 0, 0)),
                pl.BlockSpec((1, Cmid), lambda b, i: (0, 0)),
                pl.BlockSpec((Cmid, Cout_p), lambda b, i: (0, 0)),
                pl.BlockSpec((1, Cout_p), lambda b, i: (0, 0)),
            ],
            out_specs=pl.BlockSpec((1, th, W, Cout_p),
                                   lambda b, i: (b, i, 0, 0)),
        ),
        compiler_params=pltpu.CompilerParams(
            dimension_semantics=("parallel", "parallel")),
    )(x_pad, w1, shift, w2, b2)

    # Slice the channel padding off, then map NHWC channel c = a*(nc+5)+comp
    # to the PyTorch output layout (B, 3, H, W, nc+5).
    out = out_nhwc[..., :Cout].reshape(B, H, W, 3, num_classes + 5)
    return jnp.transpose(out, (0, 3, 1, 2, 4))


def scale_prediction_reference(x, p, num_classes):
    """Pure-JAX reference (f32) matching the PyTorch module in eval mode."""
    eps = 1e-5
    z = jax.lax.conv_general_dilated(
        x, p["w1"], window_strides=(1, 1), padding=((1, 1), (1, 1)),
        dimension_numbers=("NCHW", "OIHW", "NCHW"))
    scale = p["bn_gamma"] / jnp.sqrt(p["bn_var"] + eps)
    shift = p["bn_beta"] - p["bn_mean"] * scale
    z = z * scale[None, :, None, None] + shift[None, :, None, None]
    z = jnp.where(z > 0, z, 0.1 * z)
    y = jax.lax.conv_general_dilated(
        z, p["w2"], window_strides=(1, 1), padding=((0, 0), (0, 0)),
        dimension_numbers=("NCHW", "OIHW", "NCHW"))
    y = y + p["b2"][None, :, None, None]
    B, _, H, W = x.shape
    return jnp.transpose(y.reshape(B, 3, num_classes + 5, H, W),
                         (0, 1, 3, 4, 2))


def init_params(key, in_channels, num_classes):
    """Deterministic synthetic parameters in PyTorch layouts."""
    Cin = in_channels
    Cmid = 2 * Cin
    Cout = 3 * (num_classes + 5)
    ks = jax.random.split(key, 6)
    w1 = 0.1 * jax.random.normal(ks[0], (Cmid, Cin, 3, 3), jnp.float32)
    bn_gamma = 1.0 + 0.1 * jax.random.normal(ks[1], (Cmid,), jnp.float32)
    bn_beta = 0.1 * jax.random.normal(ks[2], (Cmid,), jnp.float32)
    bn_mean = 0.1 * jax.random.normal(ks[3], (Cmid,), jnp.float32)
    bn_var = jnp.abs(jax.random.normal(ks[4], (Cmid,), jnp.float32)) + 0.5
    w2 = 0.1 * jax.random.normal(ks[5], (Cout, Cmid, 1, 1), jnp.float32)
    b2 = 0.01 * jnp.arange(Cout, dtype=jnp.float32)
    return {
        "w1": w1, "bn_gamma": bn_gamma, "bn_beta": bn_beta,
        "bn_mean": bn_mean, "bn_var": bn_var, "w2": w2, "b2": b2,
    }


if __name__ == "__main__":
    B, Cin, H, W = 2, 4, 16, 16
    num_classes = 3

    key = jax.random.PRNGKey(0)
    kx, kp = jax.random.split(key)
    x = jax.random.normal(kx, (B, Cin, H, W), jnp.float32)   # NCHW like PyTorch
    params = init_params(kp, Cin, num_classes)

    out = scale_prediction(x, params, num_classes=num_classes)
    out = jax.block_until_ready(out)
    assert out.shape == (B, 3, H, W, num_classes + 5), out.shape

    ref = scale_prediction_reference(x, params, num_classes)
    err = float(jnp.max(jnp.abs(out - ref)))
    assert err < 5e-2, f"max abs error too large: {err}"
    print("KERNEL_OK")
</pallas_src>

<mosaic_0001>
module attributes {stable_mosaic.version = 11 : i64} {
  func.func @_scale_pred_kernel(%arg0: i32, %arg1: i32, %arg2: memref<1x19x24x4xbf16, #tpu.memory_space<vmem>>, %arg3: memref<9x4x8xbf16, #tpu.memory_space<vmem>>, %arg4: memref<1x8xf32, #tpu.memory_space<vmem>>, %arg5: memref<8x128xbf16, #tpu.memory_space<vmem>>, %arg6: memref<1x128xf32, #tpu.memory_space<vmem>>, %arg7: memref<1x8x16x128xf32, #tpu.memory_space<vmem>>) attributes {dimension_semantics = [#tpu.dimension_semantics<parallel>, #tpu.dimension_semantics<parallel>], iteration_bounds = array<i64: 2, 2>, scalar_prefetch = 0 : i64, scratch_operands = 0 : i64, tpu.core_type = #tpu.core_type<tc>, window_params = [{transform_indices = @transform_0, window_bounds = array<i64: 1, 19, 24, 4>}, {pipeline_mode = #tpu.pipeline_mode<synchronous>, transform_indices = @transform_1, window_bounds = array<i64: 9, 4, 8>}, {pipeline_mode = #tpu.pipeline_mode<synchronous>, transform_indices = @transform_2, window_bounds = array<i64: 1, 8>}, {pipeline_mode = #tpu.pipeline_mode<synchronous>, transform_indices = @transform_3, window_bounds = array<i64: 8, 128>}, {pipeline_mode = #tpu.pipeline_mode<synchronous>, transform_indices = @transform_4, window_bounds = array<i64: 1, 128>}, {transform_indices = @transform_5, window_bounds = array<i64: 1, 8, 16, 128>}]} {
    %c8_i32 = arith.constant 8 : i32
    %0 = arith.muli %arg1, %c8_i32 : i32
    %1 = tpu.assume_multiple %0, 8 : i32
    %cst = arith.constant 0.000000e+00 : f32
    %2 = vector.broadcast %cst : f32 to vector<192x8xf32>
    %c0_i32 = arith.constant 0 : i32
    %3 = arith.addi %1, %c0_i32 : i32
    %c0 = arith.constant 0 : index
    %4 = arith.index_cast %3 : i32 to index
    %c0_0 = arith.constant 0 : index
    %c0_1 = arith.constant 0 : index
    %5 = vector.load %arg2[%c0, %4, %c0_0, %c0_1] : memref<1x19x24x4xbf16, #tpu.memory_space<vmem>>, vector<1x9x24x4xbf16>
    %6 = vector.shape_cast %5 : vector<1x9x24x4xbf16> to vector<9x24x4xbf16>
    %7 = vector.shape_cast %6 : vector<9x24x4xbf16> to vector<216x4xbf16>
    %8 = vector.extract_strided_slice %7 {offsets = [0, 0], sizes = [192, 4], strides = [1, 1]} : vector<216x4xbf16> to vector<192x4xbf16>
    %c0_2 = arith.constant 0 : index
    %c0_3 = arith.constant 0 : index
    %c0_4 = arith.constant 0 : index
    %9 = vector.load %arg3[%c0_2, %c0_3, %c0_4] : memref<9x4x8xbf16, #tpu.memory_space<vmem>>, vector<1x4x8xbf16>
    %10 = vector.shape_cast %9 : vector<1x4x8xbf16> to vector<4x8xbf16>
    %cst_5 = arith.constant dense<0.000000e+00> : vector<192x8xf32>
    %11 = tpu.matmul %8, %10, %cst_5 {dimension_numbers = #tpu.dot_dimension_numbers<[1], [0], [0], [1], [0, 0, 1, 1], [], []>} : vector<192x4xbf16>, vector<4x8xbf16>, vector<192x8xf32> -> vector<192x8xf32>
    %12 = arith.addf %2, %11 : vector<192x8xf32>
    %13 = vector.extract_strided_slice %7 {offsets = [1, 0], sizes = [192, 4], strides = [1, 1]} : vector<216x4xbf16> to vector<192x4xbf16>
    %c1 = arith.constant 1 : index
    %c0_6 = arith.constant 0 : index
    %c0_7 = arith.constant 0 : index
    %14 = vector.load %arg3[%c1, %c0_6, %c0_7] : memref<9x4x8xbf16, #tpu.memory_space<vmem>>, vector<1x4x8xbf16>
    %15 = vector.shape_cast %14 : vector<1x4x8xbf16> to vector<4x8xbf16>
    %cst_8 = arith.constant dense<0.000000e+00> : vector<192x8xf32>
    %16 = tpu.matmul %13, %15, %cst_8 {dimension_numbers = #tpu.dot_dimension_numbers<[1], [0], [0], [1], [0, 0, 1, 1], [], []>} : vector<192x4xbf16>, vector<4x8xbf16>, vector<192x8xf32> -> vector<192x8xf32>
    %17 = arith.addf %12, %16 : vector<192x8xf32>
    %18 = vector.extract_strided_slice %7 {offsets = [2, 0], sizes = [192, 4], strides = [1, 1]} : vector<216x4xbf16> to vector<192x4xbf16>
    %c2 = arith.constant 2 : index
    %c0_9 = arith.constant 0 : index
    %c0_10 = arith.constant 0 : index
    %19 = vector.load %arg3[%c2, %c0_9, %c0_10] : memref<9x4x8xbf16, #tpu.memory_space<vmem>>, vector<1x4x8xbf16>
    %20 = vector.shape_cast %19 : vector<1x4x8xbf16> to vector<4x8xbf16>
    %cst_11 = arith.constant dense<0.000000e+00> : vector<192x8xf32>
    %21 = tpu.matmul %18, %20, %cst_11 {dimension_numbers = #tpu.dot_dimension_numbers<[1], [0], [0], [1], [0, 0, 1, 1], [], []>} : vector<192x4xbf16>, vector<4x8xbf16>, vector<192x8xf32> -> vector<192x8xf32>
    %22 = arith.addf %17, %21 : vector<192x8xf32>
    %c1_i32 = arith.constant 1 : i32
    %23 = arith.addi %1, %c1_i32 : i32
    %c0_12 = arith.constant 0 : index
    %24 = arith.index_cast %23 : i32 to index
    %c0_13 = arith.constant 0 : index
    %c0_14 = arith.constant 0 : index
    %25 = vector.load %arg2[%c0_12, %24, %c0_13, %c0_14] : memref<1x19x24x4xbf16, #tpu.memory_space<vmem>>, vector<1x9x24x4xbf16>
    %26 = vector.shape_cast %25 : vector<1x9x24x4xbf16> to vector<9x24x4xbf16>
    %27 = vector.shape_cast %26 : vector<9x24x4xbf16> to vector<216x4xbf16>
    %28 = vector.extract_strided_slice %27 {offsets = [0, 0], sizes = [192, 4], strides = [1, 1]} : vector<216x4xbf16> to vector<192x4xbf16>
    %c3 = arith.constant 3 : index
    %c0_15 = arith.constant 0 : index
    %c0_16 = arith.constant 0 : index
    %29 = vector.load %arg3[%c3, %c0_15, %c0_16] : memref<9x4x8xbf16, #tpu.memory_space<vmem>>, vector<1x4x8xbf16>
    %30 = vector.shape_cast %29 : vector<1x4x8xbf16> to vector<4x8xbf16>
    %cst_17 = arith.constant dense<0.000000e+00> : vector<192x8xf32>
    %31 = tpu.matmul %28, %30, %cst_17 {dimension_numbers = #tpu.dot_dimension_numbers<[1], [0], [0], [1], [0, 0, 1, 1], [], []>} : vector<192x4xbf16>, vector<4x8xbf16>, vector<192x8xf32> -> vector<192x8xf32>
    %32 = arith.addf %22, %31 : vector<192x8xf32>
    %33 = vector.extract_strided_slice %27 {offsets = [1, 0], sizes = [192, 4], strides = [1, 1]} : vector<216x4xbf16> to vector<192x4xbf16>
    %c4 = arith.constant 4 : index
    %c0_18 = arith.constant 0 : index
    %c0_19 = arith.constant 0 : index
    %34 = vector.load %arg3[%c4, %c0_18, %c0_19] : memref<9x4x8xbf16, #tpu.memory_space<vmem>>, vector<1x4x8xbf16>
    %35 = vector.shape_cast %34 : vector<1x4x8xbf16> to vector<4x8xbf16>
    %cst_20 = arith.constant dense<0.000000e+00> : vector<192x8xf32>
    %36 = tpu.matmul %33, %35, %cst_20 {dimension_numbers = #tpu.dot_dimension_numbers<[1], [0], [0], [1], [0, 0, 1, 1], [], []>} : vector<192x4xbf16>, vector<4x8xbf16>, vector<192x8xf32> -> vector<192x8xf32>
    %37 = arith.addf %32, %36 : vector<192x8xf32>
    %38 = vector.extract_strided_slice %27 {offsets = [2, 0], sizes = [192, 4], strides = [1, 1]} : vector<216x4xbf16> to vector<192x4xbf16>
    %c5 = arith.constant 5 : index
    %c0_21 = arith.constant 0 : index
    %c0_22 = arith.constant 0 : index
    %39 = vector.load %arg3[%c5, %c0_21, %c0_22] : memref<9x4x8xbf16, #tpu.memory_space<vmem>>, vector<1x4x8xbf16>
    %40 = vector.shape_cast %39 : vector<1x4x8xbf16> to vector<4x8xbf16>
    %cst_23 = arith.constant dense<0.000000e+00> : vector<192x8xf32>
    %41 = tpu.matmul %38, %40, %cst_23 {dimension_numbers = #tpu.dot_dimension_numbers<[1], [0], [0], [1], [0, 0, 1, 1], [], []>} : vector<192x4xbf16>, vector<4x8xbf16>, vector<192x8xf32> -> vector<192x8xf32>
    %42 = arith.addf %37, %41 : vector<192x8xf32>
    %c2_i32 = arith.constant 2 : i32
    %43 = arith.addi %1, %c2_i32 : i32
    %c0_24 = arith.constant 0 : index
    %44 = arith.index_cast %43 : i32 to index
    %c0_25 = arith.constant 0 : index
    %c0_26 = arith.constant 0 : index
    %45 = vector.load %arg2[%c0_24, %44, %c0_25, %c0_26] : memref<1x19x24x4xbf16, #tpu.memory_space<vmem>>, vector<1x9x24x4xbf16>
    %46 = vector.shape_cast %45 : vector<1x9x24x4xbf16> to vector<9x24x4xbf16>
    %47 = vector.shape_cast %46 : vector<9x24x4xbf16> to vector<216x4xbf16>
    %48 = vector.extract_strided_slice %47 {offsets = [0, 0], sizes = [192, 4], strides = [1, 1]} : vector<216x4xbf16> to vector<192x4xbf16>
    %c6 = arith.constant 6 : index
    %c0_27 = arith.constant 0 : index
    %c0_28 = arith.constant 0 : index
    %49 = vector.load %arg3[%c6, %c0_27, %c0_28] : memref<9x4x8xbf16, #tpu.memory_space<vmem>>, vector<1x4x8xbf16>
    %50 = vector.shape_cast %49 : vector<1x4x8xbf16> to vector<4x8xbf16>
    %cst_29 = arith.constant dense<0.000000e+00> : vector<192x8xf32>
    %51 = tpu.matmul %48, %50, %cst_29 {dimension_numbers = #tpu.dot_dimension_numbers<[1], [0], [0], [1], [0, 0, 1, 1], [], []>} : vector<192x4xbf16>, vector<4x8xbf16>, vector<192x8xf32> -> vector<192x8xf32>
    %52 = arith.addf %42, %51 : vector<192x8xf32>
    %53 = vector.extract_strided_slice %47 {offsets = [1, 0], sizes = [192, 4], strides = [1, 1]} : vector<216x4xbf16> to vector<192x4xbf16>
    %c7 = arith.constant 7 : index
    %c0_30 = arith.constant 0 : index
    %c0_31 = arith.constant 0 : index
    %54 = vector.load %arg3[%c7, %c0_30, %c0_31] : memref<9x4x8xbf16, #tpu.memory_space<vmem>>, vector<1x4x8xbf16>
    %55 = vector.shape_cast %54 : vector<1x4x8xbf16> to vector<4x8xbf16>
    %cst_32 = arith.constant dense<0.000000e+00> : vector<192x8xf32>
    %56 = tpu.matmul %53, %55, %cst_32 {dimension_numbers = #tpu.dot_dimension_numbers<[1], [0], [0], [1], [0, 0, 1, 1], [], []>} : vector<192x4xbf16>, vector<4x8xbf16>, vector<192x8xf32> -> vector<192x8xf32>
    %57 = arith.addf %52, %56 : vector<192x8xf32>
    %58 = vector.extract_strided_slice %47 {offsets = [2, 0], sizes = [192, 4], strides = [1, 1]} : vector<216x4xbf16> to vector<192x4xbf16>
    %c8 = arith.constant 8 : index
    %c0_33 = arith.constant 0 : index
    %c0_34 = arith.constant 0 : index
    %59 = vector.load %arg3[%c8, %c0_33, %c0_34] : memref<9x4x8xbf16, #tpu.memory_space<vmem>>, vector<1x4x8xbf16>
    %60 = vector.shape_cast %59 : vector<1x4x8xbf16> to vector<4x8xbf16>
    %cst_35 = arith.constant dense<0.000000e+00> : vector<192x8xf32>
    %61 = tpu.matmul %58, %60, %cst_35 {dimension_numbers = #tpu.dot_dimension_numbers<[1], [0], [0], [1], [0, 0, 1, 1], [], []>} : vector<192x4xbf16>, vector<4x8xbf16>, vector<192x8xf32> -> vector<192x8xf32>
    %62 = arith.addf %57, %61 : vector<192x8xf32>
    %63 = vector.shape_cast %62 : vector<192x8xf32> to vector<8x24x8xf32>
    %64 = vector.extract_strided_slice %63 {offsets = [0, 0, 0], sizes = [8, 16, 8], strides = [1, 1, 1]} : vector<8x24x8xf32> to vector<8x16x8xf32>
    %65 = vector.shape_cast %64 : vector<8x16x8xf32> to vector<128x8xf32>
    %c0_36 = arith.constant 0 : index
    %c0_37 = arith.constant 0 : index
    %66 = vector.load %arg4[%c0_36, %c0_37] : memref<1x8xf32, #tpu.memory_space<vmem>>, vector<1x8xf32>
    %67 = vector.broadcast %66 : vector<1x8xf32> to vector<128x8xf32>
    %68 = arith.addf %65, %67 : vector<128x8xf32>
    %cst_38 = arith.constant 0.000000e+00 : f32
    %69 = vector.broadcast %cst_38 : f32 to vector<128x8xf32>
    %70 = arith.cmpf ogt, %68, %69 : vector<128x8xf32>
    %cst_39 = arith.constant 1.000000e-01 : f32
    %71 = vector.broadcast %cst_39 : f32 to vector<128x8xf32>
    %72 = arith.mulf %71, %68 : vector<128x8xf32>
    %73 = arith.select %70, %68, %72 : vector<128x8xi1>, vector<128x8xf32>
    %74 = arith.truncf %73 : vector<128x8xf32> to vector<128x8xbf16>
    %c0_40 = arith.constant 0 : index
    %c0_41 = arith.constant 0 : index
    %75 = vector.load %arg5[%c0_40, %c0_41] : memref<8x128xbf16, #tpu.memory_space<vmem>>, vector<8x128xbf16>
    %cst_42 = arith.constant dense<0.000000e+00> : vector<128x128xf32>
    %76 = tpu.matmul %74, %75, %cst_42 {dimension_numbers = #tpu.dot_dimension_numbers<[1], [0], [0], [1], [0, 0, 1, 1], [], []>} : vector<128x8xbf16>, vector<8x128xbf16>, vector<128x128xf32> -> vector<128x128xf32>
    %c0_43 = arith.constant 0 : index
    %c0_44 = arith.constant 0 : index
    %77 = vector.load %arg6[%c0_43, %c0_44] : memref<1x128xf32, #tpu.memory_space<vmem>>, vector<1x128xf32>
    %78 = vector.broadcast %77 : vector<1x128xf32> to vector<128x128xf32>
    %79 = arith.addf %76, %78 : vector<128x128xf32>
    %80 = vector.shape_cast %79 : vector<128x128xf32> to vector<1x8x16x128xf32>
    %c0_45 = arith.constant 0 : index
    %c0_46 = arith.constant 0 : index
    %c0_47 = arith.constant 0 : index
    %c0_48 = arith.constant 0 : index
    %81 = vector.load %arg7[%c0_45, %c0_46, %c0_47, %c0_48] : memref<1x8x16x128xf32, #tpu.memory_space<vmem>>, vector<1x8x16x128xf32>
    tpu.vector_store %arg7[%c0_45, %c0_46, %c0_47, %c0_48], %80 {strides = array<i32>} : memref<1x8x16x128xf32, #tpu.memory_space<vmem>>, vector<1x8x16x128xf32>,
    return
  }
  func.func @transform_0(%arg0: i32, %arg1: i32) -> (i32, i32, i32, i32) {
    %c0_i32 = arith.constant 0 : i32
    %c0_i32_0 = arith.constant 0 : i32
    %c0_i32_1 = arith.constant 0 : i32
    %c0_i32_2 = arith.constant 0 : i32
    return %arg0, %c0_i32, %c0_i32_0, %c0_i32_1 : i32, i32, i32, i32
  }
  func.func @transform_1(%arg0: i32, %arg1: i32) -> (i32, i32, i32) {
    %c0_i32 = arith.constant 0 : i32
    %c0_i32_0 = arith.constant 0 : i32
    %c0_i32_1 = arith.constant 0 : i32
    %c0_i32_2 = arith.constant 0 : i32
    return %c0_i32, %c0_i32_0, %c0_i32_1 : i32, i32, i32
  }
  func.func @transform_2(%arg0: i32, %arg1: i32) -> (i32, i32) {
    %c0_i32 = arith.constant 0 : i32
    %c0_i32_0 = arith.constant 0 : i32
    %c0_i32_1 = arith.constant 0 : i32
    return %c0_i32, %c0_i32_0 : i32, i32
  }
  func.func @transform_3(%arg0: i32, %arg1: i32) -> (i32, i32) {
    %c0_i32 = arith.constant 0 : i32
    %c0_i32_0 = arith.constant 0 : i32
    %c0_i32_1 = arith.constant 0 : i32
    return %c0_i32, %c0_i32_0 : i32, i32
  }
  func.func @transform_4(%arg0: i32, %arg1: i32) -> (i32, i32) {
    %c0_i32 = arith.constant 0 : i32
    %c0_i32_0 = arith.constant 0 : i32
    %c0_i32_1 = arith.constant 0 : i32
    return %c0_i32, %c0_i32_0 : i32, i32
  }
  func.func @transform_5(%arg0: i32, %arg1: i32) -> (i32, i32, i32, i32) {
    %c0_i32 = arith.constant 0 : i32
    %c0_i32_0 = arith.constant 0 : i32
    %c0_i32_1 = arith.constant 0 : i32
    return %arg0, %arg1, %c0_i32, %c0_i32_0 : i32, i32, i32, i32
  }
}

</mosaic_0001>

<llo_original>
// kernel: scale_prediction.1
$region0: #{scale_prediction.1}
  #allocation0 [shape = 'u32[]', space=smem, size = 0x4, offset = 0x4, fixed_abs, tag = 'smem constant byte address 0x4 - core index']
  #allocation1 [shape = 'u32[72,128]{1,0:T(1,128)}', space=vmem, size = 0x9000, scoped, tag = 'internal scratch']
  %s0 = inlined_call_operand.vmem [shape: bf16[2,19,24,4], index: 0, kind: input, shape index: {}]
  %s1 = inlined_call_operand.vmem [shape: bf16[9,4,8], index: 1, kind: input, shape index: {}]
  %s2 = inlined_call_operand.vmem [shape: f32[1,8], index: 2, kind: input, shape index: {}]
  %s3 = inlined_call_operand.vmem [shape: bf16[8,128], index: 3, kind: input, shape index: {}]
  %s4 = inlined_call_operand.vmem [shape: f32[1,128], index: 4, kind: input, shape index: {}]
  %s5 = inlined_call_operand.vmem [shape: f32[2,16,16,128], index: 5, kind: output, shape index: {}]
  %s6 = sld [smem:[#allocation0]]
  $region53: #{scale_prediction.1} parent=0
    _
  %s8 = ssub.s32 1, %s6
  %s9 = scalar_select 0, %s8, %s6
  loop: start=0, step=1, limit=6
  $region2: #{scale_prediction.1} parent=0 // loop_pre_header
    _
  $region3: #{scale_prediction.1} parent=0 // loop_header
    %s11 = sphi 0, %s15
    %p12 = scmp.ge.s32.totalorder %s11, 6
    %s18 = sphi 0, %s30
    %s19 = sphi 0, %s26
    %s20 = sphi 0, %s18
    %s21 = sphi 0, %s19
    %s22 = sphi 0, %s20
    %s23 = sphi 0, %s21
    %s33 = sphi 0, %s35
    %s36 = sphi 0, %s33
    %s37 = sphi 0, %s36
    %s53 = sphi 0, %s37
    %s57 = sphi 0, %s57
    %s59 = sphi 0, %s57
    %s60 = sphi 0, %s59
    %s74 = sphi 0, %s60
    %s78 = sphi 0, %s78
    %s80 = sphi 0, %s78
    %s81 = sphi 0, %s80
    %s95 = sphi 0, %s81
    %s99 = sphi 0, %s99
    %s101 = sphi 0, %s99
    %s102 = sphi 0, %s101
    %s116 = sphi 0, %s102
    %s120 = sphi 0, %s120
    %s122 = sphi 0, %s120
    %s123 = sphi 0, %s122
    %s137 = sphi 0, %s123
    %s145 = sphi 0, %s147
    %s148 = sphi 0, %s145
    %s149 = sphi 0, %s148
    %s165 = sphi 0, %s149
  $region4: #{scale_prediction.1} parent=0 // loop_header_branch
    %14 = sbr.rel (%p12) target = $region8
  $region5: #{scale_prediction.1} parent=0 // loop_body
    %s16 = ssub.s32 %s11, 1
    %s17 = ssub.s32 %s11, 2
    %s24 = sadd.s32 1, %s19
    %p25 = scmp.ge.s32.totalorder %s24, 2
    %s26 = scalar_select %p25, 0, %s24
    %s27 = sadd.s32 1, %s18
    %s28 = scalar_select %p25, %s27, %s18
    %p29 = scmp.ge.s32.totalorder %s28, 2
    %s30 = scalar_select %p29, 0, %s28
    %s31 = ssub.s32 %s18, %s30
    %p32 = scmp.eq.s32.totalorder %s31, 0
    %s34 = sadd.s32 %s33, 1
    %s35 = scalar_select %p32, %s33, %s34
    %p38 = pneg %p32
    %p39 = scmp.eq.s32.totalorder %s11, 3
    %p40 = por %p38, %p39
    %p41 = scmp.ne.s32.totalorder %s33, %s36
    %p42 = scmp.eq.s32.totalorder %s11, 0
    %p43 = por %p41, %p42
    %p44 = scmp.ne.s32.totalorder %s33, %s36
    %p45 = scmp.eq.s32.totalorder %s16, 3
    %p46 = por %p44, %p45
    %p47 = scmp.ne.s32.totalorder %s36, %s37
    %p48 = scmp.eq.s32.totalorder %s16, 0
    %p49 = por %p47, %p48
    %p50 = scmp.ne.s32.totalorder %s36, %s37
    %p51 = scmp.eq.s32.totalorder %s17, 3
    %p52 = por %p50, %p51
    %p54 = scmp.ne.s32.totalorder %s37, %s53
    %p55 = scmp.eq.s32.totalorder %s17, 0
    %p56 = por %p54, %p55
    %s58 = sadd.s32 %s57, 1
    %p61 = scmp.eq.s32.totalorder %s11, 3
    %p62 = scmp.ne.s32.totalorder %s57, %s59
    %p63 = scmp.eq.s32.totalorder %s11, 0
    %p64 = por %p62, %p63
    %p65 = scmp.ne.s32.totalorder %s57, %s59
    %p66 = scmp.eq.s32.totalorder %s16, 3
    %p67 = por %p65, %p66
    %p68 = scmp.ne.s32.totalorder %s59, %s60
    %p69 = scmp.eq.s32.totalorder %s16, 0
    %p70 = por %p68, %p69
    %p71 = scmp.ne.s32.totalorder %s59, %s60
    %p72 = scmp.eq.s32.totalorder %s17, 3
    %p73 = por %p71, %p72
    %p75 = scmp.ne.s32.totalorder %s60, %s74
    %p76 = scmp.eq.s32.totalorder %s17, 0
    %p77 = por %p75, %p76
    %s79 = sadd.s32 %s78, 1
    %p82 = scmp.eq.s32.totalorder %s11, 3
    %p83 = scmp.ne.s32.totalorder %s78, %s80
    %p84 = scmp.eq.s32.totalorder %s11, 0
    %p85 = por %p83, %p84
    %p86 = scmp.ne.s32.totalorder %s78, %s80
    %p87 = scmp.eq.s32.totalorder %s16, 3
    %p88 = por %p86, %p87
    %p89 = scmp.ne.s32.totalorder %s80, %s81
    %p90 = scmp.eq.s32.totalorder %s16, 0
    %p91 = por %p89, %p90
    %p92 = scmp.ne.s32.totalorder %s80, %s81
    %p93 = scmp.eq.s32.totalorder %s17, 3
    %p94 = por %p92, %p93
    %p96 = scmp.ne.s32.totalorder %s81, %s95
    %p97 = scmp.eq.s32.totalorder %s17, 0
    %p98 = por %p96, %p97
    %s100 = sadd.s32 %s99, 1
    %p103 = scmp.eq.s32.totalorder %s11, 3
    %p104 = scmp.ne.s32.totalorder %s99, %s101
    %p105 = scmp.eq.s32.totalorder %s11, 0
    %p106 = por %p104, %p105
    %p107 = scmp.ne.s32.totalorder %s99, %s101
    %p108 = scmp.eq.s32.totalorder %s16, 3
    %p109 = por %p107, %p108
    %p110 = scmp.ne.s32.totalorder %s101, %s102
    %p111 = scmp.eq.s32.totalorder %s16, 0
    %p112 = por %p110, %p111
    %p113 = scmp.ne.s32.totalorder %s101, %s102
    %p114 = scmp.eq.s32.totalorder %s17, 3
    %p115 = por %p113, %p114
    %p117 = scmp.ne.s32.totalorder %s102, %s116
    %p118 = scmp.eq.s32.totalorder %s17, 0
    %p119 = por %p117, %p118
    %s121 = sadd.s32 %s120, 1
    %p124 = scmp.eq.s32.totalorder %s11, 3
    %p125 = scmp.ne.s32.totalorder %s120, %s122
    %p126 = scmp.eq.s32.totalorder %s11, 0
    %p127 = por %p125, %p126
    %p128 = scmp.ne.s32.totalorder %s120, %s122
    %p129 = scmp.eq.s32.totalorder %s16, 3
    %p130 = por %p128, %p129
    %p131 = scmp.ne.s32.totalorder %s122, %s123
    %p132 = scmp.eq.s32.totalorder %s16, 0
    %p133 = por %p131, %p132
    %p134 = scmp.ne.s32.totalorder %s122, %s123
    %p135 = scmp.eq.s32.totalorder %s17, 3
    %p136 = por %p134, %p135
    %p138 = scmp.ne.s32.totalorder %s123, %s137
    %p139 = scmp.eq.s32.totalorder %s17, 0
    %p140 = por %p138, %p139
    %s141 = ssub.s32 %s18, %s30
    %s142 = ssub.s32 %s19, %s26
    %s143 = sor.u32 %s141, %s142
    %p144 = scmp.eq.s32.totalorder %s143, 0
    %s146 = sadd.s32 %s145, 1
    %s147 = scalar_select %p144, %s145, %s146
    %p150 = pneg %p144
    %p151 = scmp.eq.s32.totalorder %s11, 3
    %p152 = por %p150, %p151
    %p153 = scmp.ne.s32.totalorder %s145, %s148
    %p154 = scmp.eq.s32.totalorder %s11, 0
    %p155 = por %p153, %p154
    %p156 = scmp.ne.s32.totalorder %s145, %s148
    %p157 = scmp.eq.s32.totalorder %s16, 3
    %p158 = por %p156, %p157
    %p159 = scmp.ne.s32.totalorder %s148, %s149
    %p160 = scmp.eq.s32.totalorder %s16, 0
    %p161 = por %p159, %p160
    %p162 = scmp.ne.s32.totalorder %s148, %s149
    %p163 = scmp.eq.s32.totalorder %s17, 3
    %p164 = por %p162, %p163
    %p166 = scmp.ne.s32.totalorder %s149, %s165
    %p167 = scmp.eq.s32.totalorder %s17, 0
    %p168 = por %p166, %p167
    %p169 = scmp.le.s32.totalorder 1, %s11
    %p170 = scmp.lt.s32.totalorder %s11, 5
    %p171 = pnand %p169, %p170
    %p172 = pneg %p171
    // Predicated region
    $region9: #{scale_prediction.1} parent=5 // pred_check
      _
    $region10: #{scale_prediction.1} parent=5 // pred_check_branch
      %174 = sbr.rel (%p171) target = $region12
    $region11: #{scale_prediction.1} parent=5 // pred_region
      %s175 = ssub.s32 %s11, 1
      // Predicated region
      $region13: #{scale_prediction.1} parent=11 // pred_check
        %p176 = pneg %p70
      $region14: #{scale_prediction.1} parent=11 // pred_check_branch
        %178 = sbr.rel (%p176) target = $region16
      $region15: #{scale_prediction.1} parent=11 // pred_region
        _
      $region16: #{scale_prediction.1} parent=11 // pred_fallthru
        _
      // Predicated region
      $region17: #{scale_prediction.1} parent=11 // pred_check
        %p179 = pneg %p91
      $region18: #{scale_prediction.1} parent=11 // pred_check_branch
        %181 = sbr.rel (%p179) target = $region20
      $region19: #{scale_prediction.1} parent=11 // pred_region
        _
      $region20: #{scale_prediction.1} parent=11 // pred_fallthru
        _
      // Predicated region
      $region21: #{scale_prediction.1} parent=11 // pred_check
        %p182 = pneg %p112
      $region22: #{scale_prediction.1} parent=11 // pred_check_branch
        %184 = sbr.rel (%p182) target = $region24
      $region23: #{scale_prediction.1} parent=11 // pred_region
        _
      $region24: #{scale_prediction.1} parent=11 // pred_fallthru
        _
      // Predicated region
      $region25: #{scale_prediction.1} parent=11 // pred_check
        %p185 = pneg %p133
      $region26: #{scale_prediction.1} parent=11 // pred_check_branch
        %187 = sbr.rel (%p185) target = $region28
      $region27: #{scale_prediction.1} parent=11 // pred_region
        _
      $region28: #{scale_prediction.1} parent=11 // pred_fallthru
        _
    $region12: #{scale_prediction.1} parent=5 // pred_fallthru
      _
    %p188 = scmp.lt.s32.totalorder %s11, 4
    // Predicated region
    $region29: #{scale_prediction.1} parent=5 // pred_check
      %p189 = pneg %p188
    $region30: #{scale_prediction.1} parent=5 // pred_check_branch
      %191 = sbr.rel (%p189) target = $region32
    $region31: #{scale_prediction.1} parent=5 // pred_region
      // Predicated region
      $region33: #{scale_prediction.1} parent=31 // pred_check
        %p192 = pneg %p43
      $region34: #{scale_prediction.1} parent=31 // pred_check_branch
        %194 = sbr.rel (%p192) target = $region36
      $region35: #{scale_prediction.1} parent=31 // pred_region
        %p195 = scmp.lt.s32.totalorder %s18, 1
        %s196 = scalar_select %p195, %s18, 1
        %s197 = smul.addr %s196, 57
        %s198 = smul.addr %s197, 4
        %s199 = scalar_lea.vmem %s0, %s198
      $region36: #{scale_prediction.1} parent=31 // pred_fallthru
        _
    $region32: #{scale_prediction.1} parent=5 // pred_fallthru
      _
    %p200 = scmp.le.s32.totalorder 1, %s11
    %p201 = scmp.lt.s32.totalorder %s11, 5
    %p202 = pnand %p200, %p201
    %p203 = pneg %p202
    // Predicated region
    $region37: #{scale_prediction.1} parent=5 // pred_check
      _
    $region38: #{scale_prediction.1} parent=5 // pred_check_branch
      %205 = sbr.rel (%p202) target = $region40
    $region39: #{scale_prediction.1} parent=5 // pred_region
      %s206 = ssub.s32 %s11, 1
      %p207 = scmp.lt.s32.totalorder %s20, 1
      %s208 = scalar_select %p207, %s20, 1
      %s209 = smul.addr %s208, 57
      %s210 = smul.addr %s209, 4
      %s211 = scalar_lea.vmem %s0, %s210
      %p212 = pneg %p49
      %p213 = pneg %p46
      %p214 = pneg %p70
      %p215 = pneg %p67
      %p216 = pneg %p91
      %p217 = pneg %p88
      %p218 = pneg %p112
      %p219 = pneg %p109
      %p220 = pneg %p133
      %p221 = pneg %p130
      %p222 = pneg %p161
      %p223 = pneg %p158
      %s224 = smul.u32 8, %s21
      %p225 = scmp.lt.s32.totalorder %s20, 1
      %s226 = scalar_select %p225, %s20, 1
      %p227 = scmp.lt.s32.totalorder %s224, 15
      %s228 = scalar_select %p227, %s224, 15
      %s229 = smul.addr %s228, 2
      %s230 = smul.addr %s226, 32
      %s231 = sadd.s32 %s229, %s230
      %s232 = smul.addr %s231, 8
      %s233 = scalar_lea.vmem %s5, %s232
      %p234 = scmp.lt.s32.totalorder %s20, 1
      %s235 = scalar_select %p234, %s20, 1
      %s236 = smul.addr %s235, 57
      %s237 = smul.addr %s236, 4
      %s238 = scalar_lea.vmem %s0, %s237
      %s239 = smul.u32 8, %s21
      %p240 = scmp.lt.s32.totalorder %s20, 1
      %s241 = scalar_select %p240, %s20, 1
      %p242 = scmp.lt.s32.totalorder %s239, 15
      %s243 = scalar_select %p242, %s239, 15
      %s244 = smul.addr %s243, 2
      %s245 = smul.addr %s241, 32
      %s246 = sadd.s32 %s244, %s245
      %s247 = smul.addr %s246, 8
      %s248 = scalar_lea.vmem %s5, %s247
      %s249 = smul.u32 8, %s21
      %s251 = smul.u32 %s21, 8
      %s252 = smul.u32 %s251, 3
      %s253 = smul.addr %s252, 4
      %s254 = scalar_lea.vmem %s238, %s253
      %v255 = vld [vmem:[%s254] sm:$0xf]
      %v256 = vld [vmem:[%s254 + $0x4] sm:$0xf]
      %v257 = vld [vmem:[%s254 + $0x8] sm:$0xf]
      %v258 = vld [vmem:[%s254 + $0xc] sm:$0xf]
      %v259 = vld [vmem:[%s254 + $0x10] sm:$0xf]
      %v260 = vld [vmem:[%s254 + $0x14] sm:$0xf]
      %v261 = vld [vmem:[%s254 + $0x18] sm:$0xf]
      %v262 = vld [vmem:[%s254 + $0x1c] sm:$0xf]
      %v263 = vld [vmem:[%s254 + $0x20] sm:$0xf]
      %v264 = vld [vmem:[%s254 + $0x24] sm:$0xf]
      %v265 = vld [vmem:[%s254 + $0x28] sm:$0xf]
      %v266 = vld [vmem:[%s254 + $0x2c] sm:$0xf]
      %v267 = vld [vmem:[%s254 + $0x30] sm:$0xf]
      %v268 = vld [vmem:[%s254 + $0x34] sm:$0xf]
      %v269 = vld [vmem:[%s254 + $0x38] sm:$0xf]
      %v270 = vld [vmem:[%s254 + $0x3c] sm:$0xf]
      %v271 = vld [vmem:[%s254 + $0x40] sm:$0xf]
      %v272 = vld [vmem:[%s254 + $0x44] sm:$0xf]
      %v273 = vld [vmem:[%s254 + $0x48] sm:$0xf]
      %v274 = vld [vmem:[%s254 + $0x4c] sm:$0xf]
      %v275 = vld [vmem:[%s254 + $0x50] sm:$0xf]
      %v276 = vld [vmem:[%s254 + $0x54] sm:$0xf]
      %v277 = vld [vmem:[%s254 + $0x58] sm:$0xf]
      %v278 = vld [vmem:[%s254 + $0x5c] sm:$0xf]
      %v279 = vld [vmem:[%s254 + $0x60] sm:$0xf]
      %v280 = vld [vmem:[%s1] sm:$0x3]
      %s281 = scalar_lea.vmem %s1, 2
      %v282 = vld [vmem:[%s281] sm:$0x3]
      %v308 = vunpack.c.l.b16 %v255
      %v309 = vunpack.c.l.b16 %v256
      %v310 = vunpack.c.l.b16 %v257
      %v311 = vunpack.c.l.b16 %v258
      %v312 = vunpack.c.l.b16 %v259
      %v313 = vunpack.c.l.b16 %v260
      %v314 = vunpack.c.l.b16 %v261
      %v315 = vunpack.c.l.b16 %v262
      %v316 = vunpack.c.l.b16 %v263
      %v317 = vunpack.c.l.b16 %v264
      %v318 = vunpack.c.l.b16 %v265
      %v319 = vunpack.c.l.b16 %v266
      %v320 = vunpack.c.l.b16 %v267
      %v321 = vunpack.c.l.b16 %v268
      %v322 = vunpack.c.l.b16 %v269
      %v323 = vunpack.c.l.b16 %v270
      %v324 = vunpack.c.l.b16 %v271
      %v325 = vunpack.c.l.b16 %v272
      %v326 = vunpack.c.l.b16 %v273
      %v327 = vunpack.c.l.b16 %v274
      %v328 = vunpack.c.l.b16 %v275
      %v329 = vunpack.c.l.b16 %v276
      %v330 = vunpack.c.l.b16 %v277
      %v331 = vunpack.c.l.b16 %v278
      %v332 = vunpack.c.l.b16 %v279
      %v333 = vpack.c.b16 %v309, %v308
      %v334 = vpack.c.b16 %v311, %v310
      %v335 = vpack.c.b16 %v313, %v312
      %v336 = vpack.c.b16 %v315, %v314
      %v337 = vpack.c.b16 %v317, %v316
      %v338 = vpack.c.b16 %v319, %v318
      %v339 = vpack.c.b16 %v321, %v320
      %v340 = vpack.c.b16 %v323, %v322
      %v341 = vpack.c.b16 %v325, %v324
      %v342 = vpack.c.b16 %v327, %v326
      %v343 = vpack.c.b16 %v329, %v328
      %v344 = vpack.c.b16 %v331, %v330
      %v345 = vpack.c.b16 %v332, %v332
      %vm346 = vsmask.f32 7424
      %v348 = vshrl.u32 %v333, 16
      %v350 = vshll.u32 %v333, 16
      %v352 = vrot.slane %v350, 1
      %v353 = vor.u32 %v348, %v352
      %v355 = vshll.u32 %v334, 16
      %v357 = vrot.slane %v355, 1
      %v358 = vsel %vm346, %v353, %v357
      %v359 = vshrl.u32 %v334, 16
      %v361 = vor.u32 %v359, %v357
      %v363 = vshll.u32 %v335, 16
      %v365 = vrot.slane %v363, 1
      %v366 = vsel %vm346, %v361, %v365
      %v367 = vshrl.u32 %v335, 16
      %v369 = vor.u32 %v367, %v365
      %v371 = vshll.u32 %v336, 16
      %v373 = vrot.slane %v371, 1
      %v374 = vsel %vm346, %v369, %v373
      %v375 = vshrl.u32 %v336, 16
      %v377 = vor.u32 %v375, %v373
      %v379 = vshll.u32 %v337, 16
      %v381 = vrot.slane %v379, 1
      %v382 = vsel %vm346, %v377, %v381
      %v383 = vshrl.u32 %v337, 16
      %v385 = vor.u32 %v383, %v381
      %v387 = vshll.u32 %v338, 16
      %v389 = vrot.slane %v387, 1
      %v390 = vsel %vm346, %v385, %v389
      %v391 = vshrl.u32 %v338, 16
      %v393 = vor.u32 %v391, %v389
      %v395 = vshll.u32 %v339, 16
      %v397 = vrot.slane %v395, 1
      %v398 = vsel %vm346, %v393, %v397
      %v399 = vshrl.u32 %v339, 16
      %v401 = vor.u32 %v399, %v397
      %v403 = vshll.u32 %v340, 16
      %v405 = vrot.slane %v403, 1
      %v406 = vsel %vm346, %v401, %v405
      %v407 = vshrl.u32 %v340, 16
      %v409 = vor.u32 %v407, %v405
      %v411 = vshll.u32 %v341, 16
      %v413 = vrot.slane %v411, 1
      %v414 = vsel %vm346, %v409, %v413
      %v415 = vshrl.u32 %v341, 16
      %v417 = vor.u32 %v415, %v413
      %v419 = vshll.u32 %v342, 16
      %v421 = vrot.slane %v419, 1
      %v422 = vsel %vm346, %v417, %v421
      %v423 = vshrl.u32 %v342, 16
      %v425 = vor.u32 %v423, %v421
      %v427 = vshll.u32 %v343, 16
      %v429 = vrot.slane %v427, 1
      %v430 = vsel %vm346, %v425, %v429
      %v431 = vshrl.u32 %v343, 16
      %v433 = vor.u32 %v431, %v429
      %v435 = vshll.u32 %v344, 16
      %v437 = vrot.slane %v435, 1
      %v438 = vsel %vm346, %v433, %v437
      %v439 = vshrl.u32 %v344, 16
      %v441 = vor.u32 %v439, %v437
      %v443 = vshll.u32 %v345, 16
      %v445 = vrot.slane %v443, 1
      %v446 = vsel %vm346, %v441, %v445
      %vm447 = vcmask 31744
      %v449 = vsel %vm447, %v358, 0
      %v452 = vsel %vm447, %v366, 0
      %v455 = vsel %vm447, %v374, 0
      %v458 = vsel %vm447, %v382, 0
      %v461 = vsel %vm447, %v390, 0
      %v464 = vsel %vm447, %v398, 0
      %v467 = vsel %vm447, %v406, 0
      %v470 = vsel %vm447, %v414, 0
      %v473 = vsel %vm447, %v422, 0
      %v476 = vsel %vm447, %v430, 0
      %v479 = vsel %vm447, %v438, 0
      %v482 = vsel %vm447, %v446, 0
      %vm484 = vcmask 1041408
      %v486 = vsel %vm484, %v282, 0
      %488 = vmatpush.bf16.msra.mxu0 0
      %489 = vmatpush.bf16.msra.mxu0 0
      %490 = vmatpush.bf16.msra.mxu0 0
      %491 = vmatpush.bf16.msra.mxu0 0
      %492 = vmatpush.bf16.msra.mxu0 0
      %493 = vmatpush.bf16.msra.mxu0 0
      %494 = vmatpush.bf16.msra.mxu0 0
      %495 = vmatpush.bf16.msra.mxu0 %v486
      %496 = vmatmul.bf16.gmra.mxu0 %v449
      %v497 = vpop.f32.mrf.mxu0
      %v498 = vadd.f32 0.0, %v497
      %v499 = vpop.f32.mrf.mxu0
      %v500 = vadd.f32 0.0, %v499
      %501 = vmatmul.bf16.gmra.mxu0 %v452
      %v502 = vpop.f32.mrf.mxu0
      %v503 = vpop.f32.mrf.mxu0
      %v504 = vadd.f32 0.0, %v503
      %505 = vmatmul.bf16.gmra.mxu0 %v455
      %v506 = vpop.f32.mrf.mxu0
      %v507 = vadd.f32 0.0, %v506
      %v508 = vpop.f32.mrf.mxu0
      %509 = vmatmul.bf16.gmra.mxu0 %v458
      %v510 = vpop.f32.mrf.mxu0
      %v511 = vadd.f32 0.0, %v510
      %v512 = vpop.f32.mrf.mxu0
      %v513 = vadd.f32 0.0, %v512
      %514 = vmatmul.bf16.gmra.mxu0 %v461
      %v515 = vpop.f32.mrf.mxu0
      %v516 = vpop.f32.mrf.mxu0
      %v517 = vadd.f32 0.0, %v516
      %518 = vmatmul.bf16.gmra.mxu0 %v464
      %v519 = vpop.f32.mrf.mxu0
      %v520 = vadd.f32 0.0, %v519
      %v521 = vpop.f32.mrf.mxu0
      %522 = vmatmul.bf16.gmra.mxu0 %v467
      %v523 = vpop.f32.mrf.mxu0
      %v524 = vadd.f32 0.0, %v523
      %v525 = vpop.f32.mrf.mxu0
      %v526 = vadd.f32 0.0, %v525
      %527 = vmatmul.bf16.gmra.mxu0 %v470
      %v528 = vpop.f32.mrf.mxu0
      %v529 = vpop.f32.mrf.mxu0
      %v530 = vadd.f32 0.0, %v529
      %531 = vmatmul.bf16.gmra.mxu0 %v473
      %v532 = vpop.f32.mrf.mxu0
      %v533 = vadd.f32 0.0, %v532
      %v534 = vpop.f32.mrf.mxu0
      %535 = vmatmul.bf16.gmra.mxu0 %v476
      %v536 = vpop.f32.mrf.mxu0
      %v537 = vadd.f32 0.0, %v536
      %v538 = vpop.f32.mrf.mxu0
      %v539 = vadd.f32 0.0, %v538
      %540 = vmatmul.bf16.gmra.mxu0 %v479
      %v541 = vpop.f32.mrf.mxu0
      %v542 = vpop.f32.mrf.mxu0
      %v543 = vadd.f32 0.0, %v542
      %544 = vmatmul.bf16.gmra.mxu0 %v482
      %v545 = vpop.f32.mrf.mxu0
      %v546 = vadd.f32 0.0, %v545
      %v547 = vpop.f32.mrf.mxu0
      %548 = vdwg.mxu0
      %v549 = vsel %vm447, %v333, 0
      %v551 = vsel %vm447, %v334, 0
      %v553 = vsel %vm447, %v335, 0
      %v555 = vsel %vm447, %v336, 0
      %v557 = vsel %vm447, %v337, 0
      %v559 = vsel %vm447, %v338, 0
      %v561 = vsel %vm447, %v339, 0
      %v563 = vsel %vm447, %v340, 0
      %v565 = vsel %vm447, %v341, 0
      %v567 = vsel %vm447, %v342, 0
      %v569 = vsel %vm447, %v343, 0
      %v571 = vsel %vm447, %v344, 0
      %v574 = vsel %vm484, %v280, 0
      %576 = vmatpush.bf16.msra.mxu0 0
      %577 = vmatpush.bf16.msra.mxu0 0
      %578 = vmatpush.bf16.msra.mxu0 0
      %579 = vmatpush.bf16.msra.mxu0 0
      %580 = vmatpush.bf16.msra.mxu0 0
      %581 = vmatpush.bf16.msra.mxu0 0
      %582 = vmatpush.bf16.msra.mxu0 0
      %583 = vmatpush.bf16.msra.mxu0 %v574
      %584 = vmatmul.bf16.gmra.mxu0 %v549
      %v585 = vpop.f32.mrf.mxu0
      %v586 = vadd.f32 %v498, %v585
      %v587 = vpop.f32.mrf.mxu0
      %v588 = vadd.f32 %v500, %v587
      %589 = vmatmul.bf16.gmra.mxu0 %v551
      %v590 = vpop.f32.mrf.mxu0
      %v591 = vpop.f32.mrf.mxu0
      %v592 = vadd.f32 %v504, %v591
      %593 = vmatmul.bf16.gmra.mxu0 %v553
      %v594 = vpop.f32.mrf.mxu0
      %v595 = vadd.f32 %v507, %v594
      %v596 = vpop.f32.mrf.mxu0
      %597 = vmatmul.bf16.gmra.mxu0 %v555
      %v598 = vpop.f32.mrf.mxu0
      %v599 = vadd.f32 %v511, %v598
      %v600 = vpop.f32.mrf.mxu0
      %v601 = vadd.f32 %v513, %v600
      %602 = vmatmul.bf16.gmra.mxu0 %v557
      %v603 = vpop.f32.mrf.mxu0
      %v604 = vpop.f32.mrf.mxu0
      %v605 = vadd.f32 %v517, %v604
      %606 = vmatmul.bf16.gmra.mxu0 %v559
      %v607 = vpop.f32.mrf.mxu0
      %v608 = vadd.f32 %v520, %v607
      %v609 = vpop.f32.mrf.mxu0
      %610 = vmatmul.bf16.gmra.mxu0 %v561
      %v611 = vpop.f32.mrf.mxu0
      %v612 = vadd.f32 %v524, %v611
      %v613 = vpop.f32.mrf.mxu0
      %v614 = vadd.f32 %v526, %v613
      %615 = vmatmul.bf16.gmra.mxu0 %v563
      %v616 = vpop.f32.mrf.mxu0
      %v617 = vpop.f32.mrf.mxu0
      %v618 = vadd.f32 %v530, %v617
      %619 = vmatmul.bf16.gmra.mxu0 %v565
      %v620 = vpop.f32.mrf.mxu0
      %v621 = vadd.f32 %v533, %v620
      %v622 = vpop.f32.mrf.mxu0
      %623 = vmatmul.bf16.gmra.mxu0 %v567
      %v624 = vpop.f32.mrf.mxu0
      %v625 = vadd.f32 %v537, %v624
      %v626 = vpop.f32.mrf.mxu0
      %v627 = vadd.f32 %v539, %v626
      %628 = vmatmul.bf16.gmra.mxu0 %v569
      %v629 = vpop.f32.mrf.mxu0
      %v630 = vpop.f32.mrf.mxu0
      %v631 = vadd.f32 %v543, %v630
      %632 = vmatmul.bf16.gmra.mxu0 %v571
      %v633 = vpop.f32.mrf.mxu0
      %v634 = vadd.f32 %v546, %v633
      %v635 = vpop.f32.mrf.mxu0
      %636 = vdwg.mxu0
      %s637 = scalar_lea.vmem %s1, 4
      %v638 = vld [vmem:[%s637] sm:$0x3]
      %vm639 = vcmask 1046528
      %v640 = vrot.slane %v333, 1
      %v641 = vrot.slane %v334, 1
      %v642 = vsel %vm639, %v640, %v641
      %v643 = vrot.slane %v335, 1
      %v644 = vsel %vm639, %v641, %v643
      %v645 = vrot.slane %v336, 1
      %v646 = vsel %vm639, %v643, %v645
      %v647 = vrot.slane %v337, 1
      %v648 = vsel %vm639, %v645, %v647
      %v649 = vrot.slane %v338, 1
      %v650 = vsel %vm639, %v647, %v649
      %v651 = vrot.slane %v339, 1
      %v652 = vsel %vm639, %v649, %v651
      %v653 = vrot.slane %v340, 1
      %v654 = vsel %vm639, %v651, %v653
      %v655 = vrot.slane %v341, 1
      %v656 = vsel %vm639, %v653, %v655
      %v657 = vrot.slane %v342, 1
      %v658 = vsel %vm639, %v655, %v657
      %v659 = vrot.slane %v343, 1
      %v660 = vsel %vm639, %v657, %v659
      %v661 = vrot.slane %v344, 1
      %v662 = vsel %vm639, %v659, %v661
      %v663 = vrot.slane %v345, 1
      %v664 = vsel %vm639, %v661, %v663
      %v666 = vsel %vm447, %v642, 0
      %v669 = vsel %vm447, %v644, 0
      %v672 = vsel %vm447, %v646, 0
      %v675 = vsel %vm447, %v648, 0
      %v678 = vsel %vm447, %v650, 0
      %v681 = vsel %vm447, %v652, 0
      %v684 = vsel %vm447, %v654, 0
      %v687 = vsel %vm447, %v656, 0
      %v690 = vsel %vm447, %v658, 0
      %v693 = vsel %vm447, %v660, 0
      %v696 = vsel %vm447, %v662, 0
      %v699 = vsel %vm447, %v664, 0
      %v702 = vsel %vm484, %v638, 0
      %704 = vmatpush.bf16.msra.mxu0 0
      %705 = vmatpush.bf16.msra.mxu0 0
      %706 = vmatpush.bf16.msra.mxu0 0
      %707 = vmatpush.bf16.msra.mxu0 0
      %708 = vmatpush.bf16.msra.mxu0 0
      %709 = vmatpush.bf16.msra.mxu0 0
      %710 = vmatpush.bf16.msra.mxu0 0
      %711 = vmatpush.bf16.msra.mxu0 %v702
      %712 = vmatmul.bf16.gmra.mxu0 %v666
      %v713 = vpop.f32.mrf.mxu0
      %v714 = vadd.f32 0.0, %v713
      %v715 = vpop.f32.mrf.mxu0
      %v716 = vadd.f32 0.0, %v715
      %717 = vmatmul.bf16.gmra.mxu0 %v669
      %v718 = vpop.f32.mrf.mxu0
      %v719 = vpop.f32.mrf.mxu0
      %v720 = vadd.f32 0.0, %v719
      %721 = vmatmul.bf16.gmra.mxu0 %v672
      %v722 = vpop.f32.mrf.mxu0
      %v723 = vadd.f32 0.0, %v722
      %v724 = vpop.f32.mrf.mxu0
      %725 = vmatmul.bf16.gmra.mxu0 %v675
      %v726 = vpop.f32.mrf.mxu0
      %v727 = vadd.f32 0.0, %v726
      %v728 = vpop.f32.mrf.mxu0
      %v729 = vadd.f32 0.0, %v728
      %730 = vmatmul.bf16.gmra.mxu0 %v678
      %v731 = vpop.f32.mrf.mxu0
      %v732 = vpop.f32.mrf.mxu0
      %v733 = vadd.f32 0.0, %v732
      %734 = vmatmul.bf16.gmra.mxu0 %v681
      %v735 = vpop.f32.mrf.mxu0
      %v736 = vadd.f32 0.0, %v735
      %v737 = vpop.f32.mrf.mxu0
      %738 = vmatmul.bf16.gmra.mxu0 %v684
      %v739 = vpop.f32.mrf.mxu0
      %v740 = vadd.f32 0.0, %v739
      %v741 = vpop.f32.mrf.mxu0
      %v742 = vadd.f32 0.0, %v741
      %743 = vmatmul.bf16.gmra.mxu0 %v687
      %v744 = vpop.f32.mrf.mxu0
      %v745 = vpop.f32.mrf.mxu0
      %v746 = vadd.f32 0.0, %v745
      %747 = vmatmul.bf16.gmra.mxu0 %v690
      %v748 = vpop.f32.mrf.mxu0
      %v749 = vadd.f32 0.0, %v748
      %v750 = vpop.f32.mrf.mxu0
      %751 = vmatmul.bf16.gmra.mxu0 %v693
      %v752 = vpop.f32.mrf.mxu0
      %v753 = vadd.f32 0.0, %v752
      %v754 = vpop.f32.mrf.mxu0
      %v755 = vadd.f32 0.0, %v754
      %756 = vmatmul.bf16.gmra.mxu0 %v696
      %v757 = vpop.f32.mrf.mxu0
      %v758 = vpop.f32.mrf.mxu0
      %v759 = vadd.f32 0.0, %v758
      %760 = vmatmul.bf16.gmra.mxu0 %v699
      %v761 = vpop.f32.mrf.mxu0
      %v762 = vadd.f32 0.0, %v761
      %v763 = vpop.f32.mrf.mxu0
      %764 = vdwg.mxu0
      %v765 = vadd.f32 %v586, %v714
      %v766 = vadd.f32 %v588, %v716
      %v767 = vadd.f32 %v592, %v720
      %v768 = vadd.f32 %v595, %v723
      %v769 = vadd.f32 %v599, %v727
      %v770 = vadd.f32 %v601, %v729
      %v771 = vadd.f32 %v605, %v733
      %v772 = vadd.f32 %v608, %v736
      %v773 = vadd.f32 %v612, %v740
      %v774 = vadd.f32 %v614, %v742
      %v775 = vadd.f32 %v618, %v746
      %v776 = vadd.f32 %v621, %v749
      %v777 = vadd.f32 %v625, %v753
      %v778 = vadd.f32 %v627, %v755
      %v779 = vadd.f32 %v631, %v759
      %v780 = vadd.f32 %v634, %v762
      %s781 = sadd.s32 %s251, 1
      %s782 = smul.u32 %s781, 3
      %s783 = smul.addr %s782, 4
      %s784 = scalar_lea.vmem %s238, %s783
      %v785 = vld [vmem:[%s784] sm:$0xf]
      %v786 = vld [vmem:[%s784 + $0x4] sm:$0xf]
      %v787 = vld [vmem:[%s784 + $0x8] sm:$0xf]
      %v788 = vld [vmem:[%s784 + $0xc] sm:$0xf]
      %v789 = vld [vmem:[%s784 + $0x10] sm:$0xf]
      %v790 = vld [vmem:[%s784 + $0x14] sm:$0xf]
      %v791 = vld [vmem:[%s784 + $0x18] sm:$0xf]
      %v792 = vld [vmem:[%s784 + $0x1c] sm:$0xf]
      %v793 = vld [vmem:[%s784 + $0x20] sm:$0xf]
      %v794 = vld [vmem:[%s784 + $0x24] sm:$0xf]
      %v795 = vld [vmem:[%s784 + $0x28] sm:$0xf]
      %v796 = vld [vmem:[%s784 + $0x2c] sm:$0xf]
      %v797 = vld [vmem:[%s784 + $0x30] sm:$0xf]
      %v798 = vld [vmem:[%s784 + $0x34] sm:$0xf]
      %v799 = vld [vmem:[%s784 + $0x38] sm:$0xf]
      %v800 = vld [vmem:[%s784 + $0x3c] sm:$0xf]
      %v801 = vld [vmem:[%s784 + $0x40] sm:$0xf]
      %v802 = vld [vmem:[%s784 + $0x44] sm:$0xf]
      %v803 = vld [vmem:[%s784 + $0x48] sm:$0xf]
      %v804 = vld [vmem:[%s784 + $0x4c] sm:$0xf]
      %v805 = vld [vmem:[%s784 + $0x50] sm:$0xf]
      %v806 = vld [vmem:[%s784 + $0x54] sm:$0xf]
      %v807 = vld [vmem:[%s784 + $0x58] sm:$0xf]
      %v808 = vld [vmem:[%s784 + $0x5c] sm:$0xf]
      %v809 = vld [vmem:[%s784 + $0x60] sm:$0xf]
      %s810 = scalar_lea.vmem %s1, 6
      %v811 = vld [vmem:[%s810] sm:$0x3]
      %v836 = vunpack.c.l.b16 %v785
      %v837 = vunpack.c.l.b16 %v786
      %v838 = vunpack.c.l.b16 %v787
      %v839 = vunpack.c.l.b16 %v788
      %v840 = vunpack.c.l.b16 %v789
      %v841 = vunpack.c.l.b16 %v790
      %v842 = vunpack.c.l.b16 %v791
      %v843 = vunpack.c.l.b16 %v792
      %v844 = vunpack.c.l.b16 %v793
      %v845 = vunpack.c.l.b16 %v794
      %v846 = vunpack.c.l.b16 %v795
      %v847 = vunpack.c.l.b16 %v796
      %v848 = vunpack.c.l.b16 %v797
      %v849 = vunpack.c.l.b16 %v798
      %v850 = vunpack.c.l.b16 %v799
      %v851 = vunpack.c.l.b16 %v800
      %v852 = vunpack.c.l.b16 %v801
      %v853 = vunpack.c.l.b16 %v802
      %v854 = vunpack.c.l.b16 %v803
      %v855 = vunpack.c.l.b16 %v804
      %v856 = vunpack.c.l.b16 %v805
      %v857 = vunpack.c.l.b16 %v806
      %v858 = vunpack.c.l.b16 %v807
      %v859 = vunpack.c.l.b16 %v808
      %v860 = vpack.c.b16 %v837, %v836
      %v861 = vpack.c.b16 %v839, %v838
      %v862 = vpack.c.b16 %v841, %v840
      %v863 = vpack.c.b16 %v843, %v842
      %v864 = vpack.c.b16 %v845, %v844
      %v865 = vpack.c.b16 %v847, %v846
      %v866 = vpack.c.b16 %v849, %v848
      %v867 = vpack.c.b16 %v851, %v850
      %v868 = vpack.c.b16 %v853, %v852
      %v869 = vpack.c.b16 %v855, %v854
      %v870 = vpack.c.b16 %v857, %v856
      %v871 = vpack.c.b16 %v859, %v858
      %v873 = vsel %vm447, %v860, 0
      %v876 = vsel %vm447, %v861, 0
      %v879 = vsel %vm447, %v862, 0
      %v882 = vsel %vm447, %v863, 0
      %v885 = vsel %vm447, %v864, 0
      %v888 = vsel %vm447, %v865, 0
      %v891 = vsel %vm447, %v866, 0
      %v894 = vsel %vm447, %v867, 0
      %v897 = vsel %vm447, %v868, 0
      %v900 = vsel %vm447, %v869, 0
      %v903 = vsel %vm447, %v870, 0
      %v906 = vsel %vm447, %v871, 0
      %v909 = vsel %vm484, %v811, 0
      %911 = vmatpush.bf16.msra.mxu0 0
      %912 = vmatpush.bf16.msra.mxu0 0
      %913 = vmatpush.bf16.msra.mxu0 0
      %914 = vmatpush.bf16.msra.mxu0 0
      %915 = vmatpush.bf16.msra.mxu0 0
      %916 = vmatpush.bf16.msra.mxu0 0
      %917 = vmatpush.bf16.msra.mxu0 0
      %918 = vmatpush.bf16.msra.mxu0 %v909
      %919 = vmatmul.bf16.gmra.mxu0 %v873
      %v920 = vpop.f32.mrf.mxu0
      %v921 = vadd.f32 0.0, %v920
      %v922 = vpop.f32.mrf.mxu0
      %v923 = vadd.f32 0.0, %v922
      %924 = vmatmul.bf16.gmra.mxu0 %v876
      %v925 = vpop.f32.mrf.mxu0
      %v926 = vpop.f32.mrf.mxu0
      %v927 = vadd.f32 0.0, %v926
      %928 = vmatmul.bf16.gmra.mxu0 %v879
      %v929 = vpop.f32.mrf.mxu0
      %v930 = vadd.f32 0.0, %v929
      %v931 = vpop.f32.mrf.mxu0
      %932 = vmatmul.bf16.gmra.mxu0 %v882
      %v933 = vpop.f32.mrf.mxu0
      %v934 = vadd.f32 0.0, %v933
      %v935 = vpop.f32.mrf.mxu0
      %v936 = vadd.f32 0.0, %v935
      %937 = vmatmul.bf16.gmra.mxu0 %v885
      %v938 = vpop.f32.mrf.mxu0
      %v939 = vpop.f32.mrf.mxu0
      %v940 = vadd.f32 0.0, %v939
      %941 = vmatmul.bf16.gmra.mxu0 %v888
      %v942 = vpop.f32.mrf.mxu0
      %v943 = vadd.f32 0.0, %v942
      %v944 = vpop.f32.mrf.mxu0
      %945 = vmatmul.bf16.gmra.mxu0 %v891
      %v946 = vpop.f32.mrf.mxu0
      %v947 = vadd.f32 0.0, %v946
      %v948 = vpop.f32.mrf.mxu0
      %v949 = vadd.f32 0.0, %v948
      %950 = vmatmul.bf16.gmra.mxu0 %v894
      %v951 = vpop.f32.mrf.mxu0
      %v952 = vpop.f32.mrf.mxu0
      %v953 = vadd.f32 0.0, %v952
      %954 = vmatmul.bf16.gmra.mxu0 %v897
      %v955 = vpop.f32.mrf.mxu0
      %v956 = vadd.f32 0.0, %v955
      %v957 = vpop.f32.mrf.mxu0
      %958 = vmatmul.bf16.gmra.mxu0 %v900
      %v959 = vpop.f32.mrf.mxu0
      %v960 = vadd.f32 0.0, %v959
      %v961 = vpop.f32.mrf.mxu0
      %v962 = vadd.f32 0.0, %v961
      %963 = vmatmul.bf16.gmra.mxu0 %v903
      %v964 = vpop.f32.mrf.mxu0
      %v965 = vpop.f32.mrf.mxu0
      %v966 = vadd.f32 0.0, %v965
      %967 = vmatmul.bf16.gmra.mxu0 %v906
      %v968 = vpop.f32.mrf.mxu0
      %v969 = vadd.f32 0.0, %v968
      %v970 = vpop.f32.mrf.mxu0
      %971 = vdwg.mxu0
      %v972 = vadd.f32 %v765, %v921
      %v973 = vadd.f32 %v766, %v923
      %v974 = vadd.f32 %v767, %v927
      %v975 = vadd.f32 %v768, %v930
      %v976 = vadd.f32 %v769, %v934
      %v977 = vadd.f32 %v770, %v936
      %v978 = vadd.f32 %v771, %v940
      %v979 = vadd.f32 %v772, %v943
      %v980 = vadd.f32 %v773, %v947
      %v981 = vadd.f32 %v774, %v949
      %v982 = vadd.f32 %v775, %v953
      %v983 = vadd.f32 %v776, %v956
      %v984 = vadd.f32 %v777, %v960
      %v985 = vadd.f32 %v778, %v962
      %v986 = vadd.f32 %v779, %v966
      %v987 = vadd.f32 %v780, %v969
      %s988 = scalar_lea.vmem %s1, 8
      %v989 = vld [vmem:[%s988] sm:$0x3]
      %v991 = vunpack.c.l.b16 %v809
      %v992 = vpack.c.b16 %v991, %v991
      %v993 = vshrl.u32 %v860, 16
      %v995 = vshll.u32 %v860, 16
      %v997 = vrot.slane %v995, 1
      %v998 = vor.u32 %v993, %v997
      %v999 = vshll.u32 %v861, 16
      %v1001 = vrot.slane %v999, 1
      %v1002 = vsel %vm346, %v998, %v1001
      %v1003 = vshrl.u32 %v861, 16
      %v1005 = vor.u32 %v1003, %v1001
      %v1006 = vshll.u32 %v862, 16
      %v1008 = vrot.slane %v1006, 1
      %v1009 = vsel %vm346, %v1005, %v1008
      %v1010 = vshrl.u32 %v862, 16
      %v1012 = vor.u32 %v1010, %v1008
      %v1013 = vshll.u32 %v863, 16
      %v1015 = vrot.slane %v1013, 1
      %v1016 = vsel %vm346, %v1012, %v1015
      %v1017 = vshrl.u32 %v863, 16
      %v1019 = vor.u32 %v1017, %v1015
      %v1020 = vshll.u32 %v864, 16
      %v1022 = vrot.slane %v1020, 1
      %v1023 = vsel %vm346, %v1019, %v1022
      %v1024 = vshrl.u32 %v864, 16
      %v1026 = vor.u32 %v1024, %v1022
      %v1027 = vshll.u32 %v865, 16
      %v1029 = vrot.slane %v1027, 1
      %v1030 = vsel %vm346, %v1026, %v1029
      %v1031 = vshrl.u32 %v865, 16
      %v1033 = vor.u32 %v1031, %v1029
      %v1034 = vshll.u32 %v866, 16
      %v1036 = vrot.slane %v1034, 1
      %v1037 = vsel %vm346, %v1033, %v1036
      %v1038 = vshrl.u32 %v866, 16
      %v1040 = vor.u32 %v1038, %v1036
      %v1041 = vshll.u32 %v867, 16
      %v1043 = vrot.slane %v1041, 1
      %v1044 = vsel %vm346, %v1040, %v1043
      %v1045 = vshrl.u32 %v867, 16
      %v1047 = vor.u32 %v1045, %v1043
      %v1048 = vshll.u32 %v868, 16
      %v1050 = vrot.slane %v1048, 1
      %v1051 = vsel %vm346, %v1047, %v1050
      %v1052 = vshrl.u32 %v868, 16
      %v1054 = vor.u32 %v1052, %v1050
      %v1055 = vshll.u32 %v869, 16
      %v1057 = vrot.slane %v1055, 1
      %v1058 = vsel %vm346, %v1054, %v1057
      %v1059 = vshrl.u32 %v869, 16
      %v1061 = vor.u32 %v1059, %v1057
      %v1062 = vshll.u32 %v870, 16
      %v1064 = vrot.slane %v1062, 1
      %v1065 = vsel %vm346, %v1061, %v1064
      %v1066 = vshrl.u32 %v870, 16
      %v1068 = vor.u32 %v1066, %v1064
      %v1069 = vshll.u32 %v871, 16
      %v1071 = vrot.slane %v1069, 1
      %v1072 = vsel %vm346, %v1068, %v1071
      %v1073 = vshrl.u32 %v871, 16
      %v1075 = vor.u32 %v1073, %v1071
      %v1077 = vshll.u32 %v992, 16
      %v1079 = vrot.slane %v1077, 1
      %v1080 = vsel %vm346, %v1075, %v1079
      %v1082 = vsel %vm447, %v1002, 0
      %v1085 = vsel %vm447, %v1009, 0
      %v1088 = vsel %vm447, %v1016, 0
      %v1091 = vsel %vm447, %v1023, 0
      %v1094 = vsel %vm447, %v1030, 0
      %v1097 = vsel %vm447, %v1037, 0
      %v1100 = vsel %vm447, %v1044, 0
      %v1103 = vsel %vm447, %v1051, 0
      %v1106 = vsel %vm447, %v1058, 0
      %v1109 = vsel %vm447, %v1065, 0
      %v1112 = vsel %vm447, %v1072, 0
      %v1115 = vsel %vm447, %v1080, 0
      %v1118 = vsel %vm484, %v989, 0
      %1120 = vmatpush.bf16.msra.mxu0 0
      %1121 = vmatpush.bf16.msra.mxu0 0
      %1122 = vmatpush.bf16.msra.mxu0 0
      %1123 = vmatpush.bf16.msra.mxu0 0
      %1124 = vmatpush.bf16.msra.mxu0 0
      %1125 = vmatpush.bf16.msra.mxu0 0
      %1126 = vmatpush.bf16.msra.mxu0 0
      %1127 = vmatpush.bf16.msra.mxu0 %v1118
      %1128 = vmatmul.bf16.gmra.mxu0 %v1082
      %v1129 = vpop.f32.mrf.mxu0
      %v1130 = vadd.f32 0.0, %v1129
      %v1131 = vpop.f32.mrf.mxu0
      %v1132 = vadd.f32 0.0, %v1131
      %1133 = vmatmul.bf16.gmra.mxu0 %v1085
      %v1134 = vpop.f32.mrf.mxu0
      %v1135 = vpop.f32.mrf.mxu0
      %v1136 = vadd.f32 0.0, %v1135
      %1137 = vmatmul.bf16.gmra.mxu0 %v1088
      %v1138 = vpop.f32.mrf.mxu0
      %v1139 = vadd.f32 0.0, %v1138
      %v1140 = vpop.f32.mrf.mxu0
      %1141 = vmatmul.bf16.gmra.mxu0 %v1091
      %v1142 = vpop.f32.mrf.mxu0
      %v1143 = vadd.f32 0.0, %v1142
      %v1144 = vpop.f32.mrf.mxu0
      %v1145 = vadd.f32 0.0, %v1144
      %1146 = vmatmul.bf16.gmra.mxu0 %v1094
      %v1147 = vpop.f32.mrf.mxu0
      %v1148 = vpop.f32.mrf.mxu0
      %v1149 = vadd.f32 0.0, %v1148
      %1150 = vmatmul.bf16.gmra.mxu0 %v1097
      %v1151 = vpop.f32.mrf.mxu0
      %v1152 = vadd.f32 0.0, %v1151
      %v1153 = vpop.f32.mrf.mxu0
      %1154 = vmatmul.bf16.gmra.mxu0 %v1100
      %v1155 = vpop.f32.mrf.mxu0
      %v1156 = vadd.f32 0.0, %v1155
      %v1157 = vpop.f32.mrf.mxu0
      %v1158 = vadd.f32 0.0, %v1157
      %1159 = vmatmul.bf16.gmra.mxu0 %v1103
      %v1160 = vpop.f32.mrf.mxu0
      %v1161 = vpop.f32.mrf.mxu0
      %v1162 = vadd.f32 0.0, %v1161
      %1163 = vmatmul.bf16.gmra.mxu0 %v1106
      %v1164 = vpop.f32.mrf.mxu0
      %v1165 = vadd.f32 0.0, %v1164
      %v1166 = vpop.f32.mrf.mxu0
      %1167 = vmatmul.bf16.gmra.mxu0 %v1109
      %v1168 = vpop.f32.mrf.mxu0
      %v1169 = vadd.f32 0.0, %v1168
      %v1170 = vpop.f32.mrf.mxu0
      %v1171 = vadd.f32 0.0, %v1170
      %1172 = vmatmul.bf16.gmra.mxu0 %v1112
      %v1173 = vpop.f32.mrf.mxu0
      %v1174 = vpop.f32.mrf.mxu0
      %v1175 = vadd.f32 0.0, %v1174
      %1176 = vmatmul.bf16.gmra.mxu0 %v1115
      %v1177 = vpop.f32.mrf.mxu0
      %v1178 = vadd.f32 0.0, %v1177
      %v1179 = vpop.f32.mrf.mxu0
      %1180 = vdwg.mxu0
      %v1181 = vadd.f32 %v972, %v1130
      %v1182 = vadd.f32 %v973, %v1132
      %v1183 = vadd.f32 %v974, %v1136
      %v1184 = vadd.f32 %v975, %v1139
      %v1185 = vadd.f32 %v976, %v1143
      %v1186 = vadd.f32 %v977, %v1145
      %v1187 = vadd.f32 %v978, %v1149
      %v1188 = vadd.f32 %v979, %v1152
      %v1189 = vadd.f32 %v980, %v1156
      %v1190 = vadd.f32 %v981, %v1158
      %v1191 = vadd.f32 %v982, %v1162
      %v1192 = vadd.f32 %v983, %v1165
      %v1193 = vadd.f32 %v984, %v1169
      %v1194 = vadd.f32 %v985, %v1171
      %v1195 = vadd.f32 %v986, %v1175
      %v1196 = vadd.f32 %v987, %v1178
      %s1197 = scalar_lea.vmem %s1, 10
      %v1198 = vld [vmem:[%s1197] sm:$0x3]
      %v1199 = vrot.slane %v860, 1
      %v1200 = vrot.slane %v861, 1
      %v1201 = vsel %vm639, %v1199, %v1200
      %v1202 = vrot.slane %v862, 1
      %v1203 = vsel %vm639, %v1200, %v1202
      %v1204 = vrot.slane %v863, 1
      %v1205 = vsel %vm639, %v1202, %v1204
      %v1206 = vrot.slane %v864, 1
      %v1207 = vsel %vm639, %v1204, %v1206
      %v1208 = vrot.slane %v865, 1
      %v1209 = vsel %vm639, %v1206, %v1208
      %v1210 = vrot.slane %v866, 1
      %v1211 = vsel %vm639, %v1208, %v1210
      %v1212 = vrot.slane %v867, 1
      %v1213 = vsel %vm639, %v1210, %v1212
      %v1214 = vrot.slane %v868, 1
      %v1215 = vsel %vm639, %v1212, %v1214
      %v1216 = vrot.slane %v869, 1
      %v1217 = vsel %vm639, %v1214, %v1216
      %v1218 = vrot.slane %v870, 1
      %v1219 = vsel %vm639, %v1216, %v1218
      %v1220 = vrot.slane %v871, 1
      %v1221 = vsel %vm639, %v1218, %v1220
      %v1222 = vrot.slane %v992, 1
      %v1223 = vsel %vm639, %v1220, %v1222
      %v1225 = vsel %vm447, %v1201, 0
      %v1228 = vsel %vm447, %v1203, 0
      %v1231 = vsel %vm447, %v1205, 0
      %v1234 = vsel %vm447, %v1207, 0
      %v1237 = vsel %vm447, %v1209, 0
      %v1240 = vsel %vm447, %v1211, 0
      %v1243 = vsel %vm447, %v1213, 0
      %v1246 = vsel %vm447, %v1215, 0
      %v1249 = vsel %vm447, %v1217, 0
      %v1252 = vsel %vm447, %v1219, 0
      %v1255 = vsel %vm447, %v1221, 0
      %v1258 = vsel %vm447, %v1223, 0
      %v1261 = vsel %vm484, %v1198, 0
      %1263 = vmatpush.bf16.msra.mxu0 0
      %1264 = vmatpush.bf16.msra.mxu0 0
      %1265 = vmatpush.bf16.msra.mxu0 0
      %1266 = vmatpush.bf16.msra.mxu0 0
      %1267 = vmatpush.bf16.msra.mxu0 0
      %1268 = vmatpush.bf16.msra.mxu0 0
      %1269 = vmatpush.bf16.msra.mxu0 0
      %1270 = vmatpush.bf16.msra.mxu0 %v1261
      %1271 = vmatmul.bf16.gmra.mxu0 %v1225
      %v1272 = vpop.f32.mrf.mxu0
      %v1273 = vadd.f32 0.0, %v1272
      %v1274 = vpop.f32.mrf.mxu0
      %v1275 = vadd.f32 0.0, %v1274
      %1276 = vmatmul.bf16.gmra.mxu0 %v1228
      %v1277 = vpop.f32.mrf.mxu0
      %v1278 = vpop.f32.mrf.mxu0
      %v1279 = vadd.f32 0.0, %v1278
      %1280 = vmatmul.bf16.gmra.mxu0 %v1231
      %v1281 = vpop.f32.mrf.mxu0
      %v1282 = vadd.f32 0.0, %v1281
      %v1283 = vpop.f32.mrf.mxu0
      %1284 = vmatmul.bf16.gmra.mxu0 %v1234
      %v1285 = vpop.f32.mrf.mxu0
      %v1286 = vadd.f32 0.0, %v1285
      %v1287 = vpop.f32.mrf.mxu0
      %v1288 = vadd.f32 0.0, %v1287
      %1289 = vmatmul.bf16.gmra.mxu0 %v1237
      %v1290 = vpop.f32.mrf.mxu0
      %v1291 = vpop.f32.mrf.mxu0
      %v1292 = vadd.f32 0.0, %v1291
      %1293 = vmatmul.bf16.gmra.mxu0 %v1240
      %v1294 = vpop.f32.mrf.mxu0
      %v1295 = vadd.f32 0.0, %v1294
      %v1296 = vpop.f32.mrf.mxu0
      %1297 = vmatmul.bf16.gmra.mxu0 %v1243
      %v1298 = vpop.f32.mrf.mxu0
      %v1299 = vadd.f32 0.0, %v1298
      %v1300 = vpop.f32.mrf.mxu0
      %v1301 = vadd.f32 0.0, %v1300
      %1302 = vmatmul.bf16.gmra.mxu0 %v1246
      %v1303 = vpop.f32.mrf.mxu0
      %v1304 = vpop.f32.mrf.mxu0
      %v1305 = vadd.f32 0.0, %v1304
      %1306 = vmatmul.bf16.gmra.mxu0 %v1249
      %v1307 = vpop.f32.mrf.mxu0
      %v1308 = vadd.f32 0.0, %v1307
      %v1309 = vpop.f32.mrf.mxu0
      %1310 = vmatmul.bf16.gmra.mxu0 %v1252
      %v1311 = vpop.f32.mrf.mxu0
      %v1312 = vadd.f32 0.0, %v1311
      %v1313 = vpop.f32.mrf.mxu0
      %v1314 = vadd.f32 0.0, %v1313
      %1315 = vmatmul.bf16.gmra.mxu0 %v1255
      %v1316 = vpop.f32.mrf.mxu0
      %v1317 = vpop.f32.mrf.mxu0
      %v1318 = vadd.f32 0.0, %v1317
      %1319 = vmatmul.bf16.gmra.mxu0 %v1258
      %v1320 = vpop.f32.mrf.mxu0
      %v1321 = vadd.f32 0.0, %v1320
      %v1322 = vpop.f32.mrf.mxu0
      %1323 = vdwg.mxu0
      %v1324 = vadd.f32 %v1181, %v1273
      %v1325 = vadd.f32 %v1182, %v1275
      %v1326 = vadd.f32 %v1183, %v1279
      %v1327 = vadd.f32 %v1184, %v1282
      %v1328 = vadd.f32 %v1185, %v1286
      %v1329 = vadd.f32 %v1186, %v1288
      %v1330 = vadd.f32 %v1187, %v1292
      %v1331 = vadd.f32 %v1188, %v1295
      %v1332 = vadd.f32 %v1189, %v1299
      %v1333 = vadd.f32 %v1190, %v1301
      %v1334 = vadd.f32 %v1191, %v1305
      %v1335 = vadd.f32 %v1192, %v1308
      %v1336 = vadd.f32 %v1193, %v1312
      %v1337 = vadd.f32 %v1194, %v1314
      %v1338 = vadd.f32 %v1195, %v1318
      %v1339 = vadd.f32 %v1196, %v1321
      %s1340 = sadd.s32 %s251, 2
      %s1341 = smul.u32 %s1340, 3
      %s1342 = smul.addr %s1341, 4
      %s1343 = scalar_lea.vmem %s238, %s1342
      %v1344 = vld [vmem:[%s1343] sm:$0xf]
      %v1345 = vld [vmem:[%s1343 + $0x4] sm:$0xf]
      %v1346 = vld [vmem:[%s1343 + $0x8] sm:$0xf]
      %v1347 = vld [vmem:[%s1343 + $0xc] sm:$0xf]
      %v1348 = vld [vmem:[%s1343 + $0x10] sm:$0xf]
      %v1349 = vld [vmem:[%s1343 + $0x14] sm:$0xf]
      %v1350 = vld [vmem:[%s1343 + $0x18] sm:$0xf]
      %v1351 = vld [vmem:[%s1343 + $0x1c] sm:$0xf]
      %v1352 = vld [vmem:[%s1343 + $0x20] sm:$0xf]
      %v1353 = vld [vmem:[%s1343 + $0x24] sm:$0xf]
      %v1354 = vld [vmem:[%s1343 + $0x28] sm:$0xf]
      %v1355 = vld [vmem:[%s1343 + $0x2c] sm:$0xf]
      %v1356 = vld [vmem:[%s1343 + $0x30] sm:$0xf]
      %v1357 = vld [vmem:[%s1343 + $0x34] sm:$0xf]
      %v1358 = vld [vmem:[%s1343 + $0x38] sm:$0xf]
      %v1359 = vld [vmem:[%s1343 + $0x3c] sm:$0xf]
      %v1360 = vld [vmem:[%s1343 + $0x40] sm:$0xf]
      %v1361 = vld [vmem:[%s1343 + $0x44] sm:$0xf]
      %v1362 = vld [vmem:[%s1343 + $0x48] sm:$0xf]
      %v1363 = vld [vmem:[%s1343 + $0x4c] sm:$0xf]
      %v1364 = vld [vmem:[%s1343 + $0x50] sm:$0xf]
      %v1365 = vld [vmem:[%s1343 + $0x54] sm:$0xf]
      %v1366 = vld [vmem:[%s1343 + $0x58] sm:$0xf]
      %v1367 = vld [vmem:[%s1343 + $0x5c] sm:$0xf]
      %v1368 = vld [vmem:[%s1343 + $0x60] sm:$0xf]
      %s1369 = scalar_lea.vmem %s1, 12
      %v1370 = vld [vmem:[%s1369] sm:$0x3]
      %v1395 = vunpack.c.l.b16 %v1344
      %v1396 = vunpack.c.l.b16 %v1345
      %v1397 = vunpack.c.l.b16 %v1346
      %v1398 = vunpack.c.l.b16 %v1347
      %v1399 = vunpack.c.l.b16 %v1348
      %v1400 = vunpack.c.l.b16 %v1349
      %v1401 = vunpack.c.l.b16 %v1350
      %v1402 = vunpack.c.l.b16 %v1351
      %v1403 = vunpack.c.l.b16 %v1352
      %v1404 = vunpack.c.l.b16 %v1353
      %v1405 = vunpack.c.l.b16 %v1354
      %v1406 = vunpack.c.l.b16 %v1355
      %v1407 = vunpack.c.l.b16 %v1356
      %v1408 = vunpack.c.l.b16 %v1357
      %v1409 = vunpack.c.l.b16 %v1358
      %v1410 = vunpack.c.l.b16 %v1359
      %v1411 = vunpack.c.l.b16 %v1360
      %v1412 = vunpack.c.l.b16 %v1361
      %v1413 = vunpack.c.l.b16 %v1362
      %v1414 = vunpack.c.l.b16 %v1363
      %v1415 = vunpack.c.l.b16 %v1364
      %v1416 = vunpack.c.l.b16 %v1365
      %v1417 = vunpack.c.l.b16 %v1366
      %v1418 = vunpack.c.l.b16 %v1367
      %v1419 = vpack.c.b16 %v1396, %v1395
      %v1420 = vpack.c.b16 %v1398, %v1397
      %v1421 = vpack.c.b16 %v1400, %v1399
      %v1422 = vpack.c.b16 %v1402, %v1401
      %v1423 = vpack.c.b16 %v1404, %v1403
      %v1424 = vpack.c.b16 %v1406, %v1405
      %v1425 = vpack.c.b16 %v1408, %v1407
      %v1426 = vpack.c.b16 %v1410, %v1409
      %v1427 = vpack.c.b16 %v1412, %v1411
      %v1428 = vpack.c.b16 %v1414, %v1413
      %v1429 = vpack.c.b16 %v1416, %v1415
      %v1430 = vpack.c.b16 %v1418, %v1417
      %v1432 = vsel %vm447, %v1419, 0
      %v1435 = vsel %vm447, %v1420, 0
      %v1438 = vsel %vm447, %v1421, 0
      %v1441 = vsel %vm447, %v1422, 0
      %v1444 = vsel %vm447, %v1423, 0
      %v1447 = vsel %vm447, %v1424, 0
      %v1450 = vsel %vm447, %v1425, 0
      %v1453 = vsel %vm447, %v1426, 0
      %v1456 = vsel %vm447, %v1427, 0
      %v1459 = vsel %vm447, %v1428, 0
      %v1462 = vsel %vm447, %v1429, 0
      %v1465 = vsel %vm447, %v1430, 0
      %v1468 = vsel %vm484, %v1370, 0
      %1470 = vmatpush.bf16.msra.mxu0 0
      %1471 = vmatpush.bf16.msra.mxu0 0
      %1472 = vmatpush.bf16.msra.mxu0 0
      %1473 = vmatpush.bf16.msra.mxu0 0
      %1474 = vmatpush.bf16.msra.mxu0 0
      %1475 = vmatpush.bf16.msra.mxu0 0
      %1476 = vmatpush.bf16.msra.mxu0 0
      %1477 = vmatpush.bf16.msra.mxu0 %v1468
      %1478 = vmatmul.bf16.gmra.mxu0 %v1432
      %v1479 = vpop.f32.mrf.mxu0
      %v1480 = vadd.f32 0.0, %v1479
      %v1481 = vpop.f32.mrf.mxu0
      %v1482 = vadd.f32 0.0, %v1481
      %1483 = vmatmul.bf16.gmra.mxu0 %v1435
      %v1484 = vpop.f32.mrf.mxu0
      %v1485 = vpop.f32.mrf.mxu0
      %v1486 = vadd.f32 0.0, %v1485
      %1487 = vmatmul.bf16.gmra.mxu0 %v1438
      %v1488 = vpop.f32.mrf.mxu0
      %v1489 = vadd.f32 0.0, %v1488
      %v1490 = vpop.f32.mrf.mxu0
      %1491 = vmatmul.bf16.gmra.mxu0 %v1441
      %v1492 = vpop.f32.mrf.mxu0
      %v1493 = vadd.f32 0.0, %v1492
      %v1494 = vpop.f32.mrf.mxu0
      %v1495 = vadd.f32 0.0, %v1494
      %1496 = vmatmul.bf16.gmra.mxu0 %v1444
      %v1497 = vpop.f32.mrf.mxu0
      %v1498 = vpop.f32.mrf.mxu0
      %v1499 = vadd.f32 0.0, %v1498
      %1500 = vmatmul.bf16.gmra.mxu0 %v1447
      %v1501 = vpop.f32.mrf.mxu0
      %v1502 = vadd.f32 0.0, %v1501
      %v1503 = vpop.f32.mrf.mxu0
      %1504 = vmatmul.bf16.gmra.mxu0 %v1450
      %v1505 = vpop.f32.mrf.mxu0
      %v1506 = vadd.f32 0.0, %v1505
      %v1507 = vpop.f32.mrf.mxu0
      %v1508 = vadd.f32 0.0, %v1507
      %1509 = vmatmul.bf16.gmra.mxu0 %v1453
      %v1510 = vpop.f32.mrf.mxu0
      %v1511 = vpop.f32.mrf.mxu0
      %v1512 = vadd.f32 0.0, %v1511
      %1513 = vmatmul.bf16.gmra.mxu0 %v1456
      %v1514 = vpop.f32.mrf.mxu0
      %v1515 = vadd.f32 0.0, %v1514
      %v1516 = vpop.f32.mrf.mxu0
      %1517 = vmatmul.bf16.gmra.mxu0 %v1459
      %v1518 = vpop.f32.mrf.mxu0
      %v1519 = vadd.f32 0.0, %v1518
      %v1520 = vpop.f32.mrf.mxu0
      %v1521 = vadd.f32 0.0, %v1520
      %1522 = vmatmul.bf16.gmra.mxu0 %v1462
      %v1523 = vpop.f32.mrf.mxu0
      %v1524 = vpop.f32.mrf.mxu0
      %v1525 = vadd.f32 0.0, %v1524
      %1526 = vmatmul.bf16.gmra.mxu0 %v1465
      %v1527 = vpop.f32.mrf.mxu0
      %v1528 = vadd.f32 0.0, %v1527
      %v1529 = vpop.f32.mrf.mxu0
      %1530 = vdwg.mxu0
      %v1531 = vadd.f32 %v1324, %v1480
      %v1532 = vadd.f32 %v1325, %v1482
      %v1533 = vadd.f32 %v1326, %v1486
      %v1534 = vadd.f32 %v1327, %v1489
      %v1535 = vadd.f32 %v1328, %v1493
      %v1536 = vadd.f32 %v1329, %v1495
      %v1537 = vadd.f32 %v1330, %v1499
      %v1538 = vadd.f32 %v1331, %v1502
      %v1539 = vadd.f32 %v1332, %v1506
      %v1540 = vadd.f32 %v1333, %v1508
      %v1541 = vadd.f32 %v1334, %v1512
      %v1542 = vadd.f32 %v1335, %v1515
      %v1543 = vadd.f32 %v1336, %v1519
      %v1544 = vadd.f32 %v1337, %v1521
      %v1545 = vadd.f32 %v1338, %v1525
      %v1546 = vadd.f32 %v1339, %v1528
      %s1547 = scalar_lea.vmem %s1, 14
      %v1548 = vld [vmem:[%s1547] sm:$0x3]
      %v1550 = vunpack.c.l.b16 %v1368
      %v1551 = vpack.c.b16 %v1550, %v1550
      %v1552 = vshrl.u32 %v1419, 16
      %v1554 = vshll.u32 %v1419, 16
      %v1556 = vrot.slane %v1554, 1
      %v1557 = vor.u32 %v1552, %v1556
      %v1558 = vshll.u32 %v1420, 16
      %v1560 = vrot.slane %v1558, 1
      %v1561 = vsel %vm346, %v1557, %v1560
      %v1562 = vshrl.u32 %v1420, 16
      %v1564 = vor.u32 %v1562, %v1560
      %v1565 = vshll.u32 %v1421, 16
      %v1567 = vrot.slane %v1565, 1
      %v1568 = vsel %vm346, %v1564, %v1567
      %v1569 = vshrl.u32 %v1421, 16
      %v1571 = vor.u32 %v1569, %v1567
      %v1572 = vshll.u32 %v1422, 16
      %v1574 = vrot.slane %v1572, 1
      %v1575 = vsel %vm346, %v1571, %v1574
      %v1576 = vshrl.u32 %v1422, 16
      %v1578 = vor.u32 %v1576, %v1574
      %v1579 = vshll.u32 %v1423, 16
      %v1581 = vrot.slane %v1579, 1
      %v1582 = vsel %vm346, %v1578, %v1581
      %v1583 = vshrl.u32 %v1423, 16
      %v1585 = vor.u32 %v1583, %v1581
      %v1586 = vshll.u32 %v1424, 16
      %v1588 = vrot.slane %v1586, 1
      %v1589 = vsel %vm346, %v1585, %v1588
      %v1590 = vshrl.u32 %v1424, 16
      %v1592 = vor.u32 %v1590, %v1588
      %v1593 = vshll.u32 %v1425, 16
      %v1595 = vrot.slane %v1593, 1
      %v1596 = vsel %vm346, %v1592, %v1595
      %v1597 = vshrl.u32 %v1425, 16
      %v1599 = vor.u32 %v1597, %v1595
      %v1600 = vshll.u32 %v1426, 16
      %v1602 = vrot.slane %v1600, 1
      %v1603 = vsel %vm346, %v1599, %v1602
      %v1604 = vshrl.u32 %v1426, 16
      %v1606 = vor.u32 %v1604, %v1602
      %v1607 = vshll.u32 %v1427, 16
      %v1609 = vrot.slane %v1607, 1
      %v1610 = vsel %vm346, %v1606, %v1609
      %v1611 = vshrl.u32 %v1427, 16
      %v1613 = vor.u32 %v1611, %v1609
      %v1614 = vshll.u32 %v1428, 16
      %v1616 = vrot.slane %v1614, 1
      %v1617 = vsel %vm346, %v1613, %v1616
      %v1618 = vshrl.u32 %v1428, 16
      %v1620 = vor.u32 %v1618, %v1616
      %v1621 = vshll.u32 %v1429, 16
      %v1623 = vrot.slane %v1621, 1
      %v1624 = vsel %vm346, %v1620, %v1623
      %v1625 = vshrl.u32 %v1429, 16
      %v1627 = vor.u32 %v1625, %v1623
      %v1628 = vshll.u32 %v1430, 16
      %v1630 = vrot.slane %v1628, 1
      %v1631 = vsel %vm346, %v1627, %v1630
      %v1632 = vshrl.u32 %v1430, 16
      %v1634 = vor.u32 %v1632, %v1630
      %v1636 = vshll.u32 %v1551, 16
      %v1638 = vrot.slane %v1636, 1
      %v1639 = vsel %vm346, %v1634, %v1638
      %v1641 = vsel %vm447, %v1561, 0
      %v1644 = vsel %vm447, %v1568, 0
      %v1647 = vsel %vm447, %v1575, 0
      %v1650 = vsel %vm447, %v1582, 0
      %v1653 = vsel %vm447, %v1589, 0
      %v1656 = vsel %vm447, %v1596, 0
      %v1659 = vsel %vm447, %v1603, 0
      %v1662 = vsel %vm447, %v1610, 0
      %v1665 = vsel %vm447, %v1617, 0
      %v1668 = vsel %vm447, %v1624, 0
      %v1671 = vsel %vm447, %v1631, 0
      %v1674 = vsel %vm447, %v1639, 0
      %v1677 = vsel %vm484, %v1548, 0
      %1679 = vmatpush.bf16.msra.mxu0 0
      %1680 = vmatpush.bf16.msra.mxu0 0
      %1681 = vmatpush.bf16.msra.mxu0 0
      %1682 = vmatpush.bf16.msra.mxu0 0
      %1683 = vmatpush.bf16.msra.mxu0 0
      %1684 = vmatpush.bf16.msra.mxu0 0
      %1685 = vmatpush.bf16.msra.mxu0 0
      %1686 = vmatpush.bf16.msra.mxu0 %v1677
      %1687 = vmatmul.bf16.gmra.mxu0 %v1641
      %v1688 = vpop.f32.mrf.mxu0
      %v1689 = vadd.f32 0.0, %v1688
      %v1690 = vpop.f32.mrf.mxu0
      %v1691 = vadd.f32 0.0, %v1690
      %1692 = vmatmul.bf16.gmra.mxu0 %v1644
      %v1693 = vpop.f32.mrf.mxu0
      %v1694 = vpop.f32.mrf.mxu0
      %v1695 = vadd.f32 0.0, %v1694
      %1696 = vmatmul.bf16.gmra.mxu0 %v1647
      %v1697 = vpop.f32.mrf.mxu0
      %v1698 = vadd.f32 0.0, %v1697
      %v1699 = vpop.f32.mrf.mxu0
      %1700 = vmatmul.bf16.gmra.mxu0 %v1650
      %v1701 = vpop.f32.mrf.mxu0
      %v1702 = vadd.f32 0.0, %v1701
      %v1703 = vpop.f32.mrf.mxu0
      %v1704 = vadd.f32 0.0, %v1703
      %1705 = vmatmul.bf16.gmra.mxu0 %v1653
      %v1706 = vpop.f32.mrf.mxu0
      %v1707 = vpop.f32.mrf.mxu0
      %v1708 = vadd.f32 0.0, %v1707
      %1709 = vmatmul.bf16.gmra.mxu0 %v1656
      %v1710 = vpop.f32.mrf.mxu0
      %v1711 = vadd.f32 0.0, %v1710
      %v1712 = vpop.f32.mrf.mxu0
      %1713 = vmatmul.bf16.gmra.mxu0 %v1659
      %v1714 = vpop.f32.mrf.mxu0
      %v1715 = vadd.f32 0.0, %v1714
      %v1716 = vpop.f32.mrf.mxu0
      %v1717 = vadd.f32 0.0, %v1716
      %1718 = vmatmul.bf16.gmra.mxu0 %v1662
      %v1719 = vpop.f32.mrf.mxu0
      %v1720 = vpop.f32.mrf.mxu0
      %v1721 = vadd.f32 0.0, %v1720
      %1722 = vmatmul.bf16.gmra.mxu0 %v1665
      %v1723 = vpop.f32.mrf.mxu0
      %v1724 = vadd.f32 0.0, %v1723
      %v1725 = vpop.f32.mrf.mxu0
      %1726 = vmatmul.bf16.gmra.mxu0 %v1668
      %v1727 = vpop.f32.mrf.mxu0
      %v1728 = vadd.f32 0.0, %v1727
      %v1729 = vpop.f32.mrf.mxu0
      %v1730 = vadd.f32 0.0, %v1729
      %1731 = vmatmul.bf16.gmra.mxu0 %v1671
      %v1732 = vpop.f32.mrf.mxu0
      %v1733 = vpop.f32.mrf.mxu0
      %v1734 = vadd.f32 0.0, %v1733
      %1735 = vmatmul.bf16.gmra.mxu0 %v1674
      %v1736 = vpop.f32.mrf.mxu0
      %v1737 = vadd.f32 0.0, %v1736
      %v1738 = vpop.f32.mrf.mxu0
      %1739 = vdwg.mxu0
      %v1740 = vadd.f32 %v1531, %v1689
      %v1741 = vadd.f32 %v1532, %v1691
      %v1742 = vadd.f32 %v1533, %v1695
      %v1743 = vadd.f32 %v1534, %v1698
      %v1744 = vadd.f32 %v1535, %v1702
      %v1745 = vadd.f32 %v1536, %v1704
      %v1746 = vadd.f32 %v1537, %v1708
      %v1747 = vadd.f32 %v1538, %v1711
      %v1748 = vadd.f32 %v1539, %v1715
      %v1749 = vadd.f32 %v1540, %v1717
      %v1750 = vadd.f32 %v1541, %v1721
      %v1751 = vadd.f32 %v1542, %v1724
      %v1752 = vadd.f32 %v1543, %v1728
      %v1753 = vadd.f32 %v1544, %v1730
      %v1754 = vadd.f32 %v1545, %v1734
      %v1755 = vadd.f32 %v1546, %v1737
      %s1756 = scalar_lea.vmem %s1, 16
      %v1757 = vld [vmem:[%s1756] sm:$0x3]
      %v1758 = vrot.slane %v1419, 1
      %v1759 = vrot.slane %v1420, 1
      %v1760 = vsel %vm639, %v1758, %v1759
      %v1761 = vrot.slane %v1421, 1
      %v1762 = vsel %vm639, %v1759, %v1761
      %v1763 = vrot.slane %v1422, 1
      %v1764 = vsel %vm639, %v1761, %v1763
      %v1765 = vrot.slane %v1423, 1
      %v1766 = vsel %vm639, %v1763, %v1765
      %v1767 = vrot.slane %v1424, 1
      %v1768 = vsel %vm639, %v1765, %v1767
      %v1769 = vrot.slane %v1425, 1
      %v1770 = vsel %vm639, %v1767, %v1769
      %v1771 = vrot.slane %v1426, 1
      %v1772 = vsel %vm639, %v1769, %v1771
      %v1773 = vrot.slane %v1427, 1
      %v1774 = vsel %vm639, %v1771, %v1773
      %v1775 = vrot.slane %v1428, 1
      %v1776 = vsel %vm639, %v1773, %v1775
      %v1777 = vrot.slane %v1429, 1
      %v1778 = vsel %vm639, %v1775, %v1777
      %v1779 = vrot.slane %v1430, 1
      %v1780 = vsel %vm639, %v1777, %v1779
      %v1781 = vrot.slane %v1551, 1
      %v1782 = vsel %vm639, %v1779, %v1781
      %v1784 = vsel %vm447, %v1760, 0
      %v1787 = vsel %vm447, %v1762, 0
      %v1790 = vsel %vm447, %v1764, 0
      %v1793 = vsel %vm447, %v1766, 0
      %v1796 = vsel %vm447, %v1768, 0
      %v1799 = vsel %vm447, %v1770, 0
      %v1802 = vsel %vm447, %v1772, 0
      %v1805 = vsel %vm447, %v1774, 0
      %v1808 = vsel %vm447, %v1776, 0
      %v1811 = vsel %vm447, %v1778, 0
      %v1814 = vsel %vm447, %v1780, 0
      %v1817 = vsel %vm447, %v1782, 0
      %v1820 = vsel %vm484, %v1757, 0
      %1822 = vmatpush.bf16.msra.mxu0 0
      %1823 = vmatpush.bf16.msra.mxu0 0
      %1824 = vmatpush.bf16.msra.mxu0 0
      %1825 = vmatpush.bf16.msra.mxu0 0
      %1826 = vmatpush.bf16.msra.mxu0 0
      %1827 = vmatpush.bf16.msra.mxu0 0
      %1828 = vmatpush.bf16.msra.mxu0 0
      %1829 = vmatpush.bf16.msra.mxu0 %v1820
      %1830 = vmatmul.bf16.gmra.mxu0 %v1784
      %v1831 = vpop.f32.mrf.mxu0
      %v1832 = vadd.f32 0.0, %v1831
      %v1833 = vpop.f32.mrf.mxu0
      %v1834 = vadd.f32 0.0, %v1833
      %1835 = vmatmul.bf16.gmra.mxu0 %v1787
      %v1836 = vpop.f32.mrf.mxu0
      %v1837 = vpop.f32.mrf.mxu0
      %v1838 = vadd.f32 0.0, %v1837
      %1839 = vmatmul.bf16.gmra.mxu0 %v1790
      %v1840 = vpop.f32.mrf.mxu0
      %v1841 = vadd.f32 0.0, %v1840
      %v1842 = vpop.f32.mrf.mxu0
      %1843 = vmatmul.bf16.gmra.mxu0 %v1793
      %v1844 = vpop.f32.mrf.mxu0
      %v1845 = vadd.f32 0.0, %v1844
      %v1846 = vpop.f32.mrf.mxu0
      %v1847 = vadd.f32 0.0, %v1846
      %1848 = vmatmul.bf16.gmra.mxu0 %v1796
      %v1849 = vpop.f32.mrf.mxu0
      %v1850 = vpop.f32.mrf.mxu0
      %v1851 = vadd.f32 0.0, %v1850
      %1852 = vmatmul.bf16.gmra.mxu0 %v1799
      %v1853 = vpop.f32.mrf.mxu0
      %v1854 = vadd.f32 0.0, %v1853
      %v1855 = vpop.f32.mrf.mxu0
      %1856 = vmatmul.bf16.gmra.mxu0 %v1802
      %v1857 = vpop.f32.mrf.mxu0
      %v1858 = vadd.f32 0.0, %v1857
      %v1859 = vpop.f32.mrf.mxu0
      %v1860 = vadd.f32 0.0, %v1859
      %1861 = vmatmul.bf16.gmra.mxu0 %v1805
      %v1862 = vpop.f32.mrf.mxu0
      %v1863 = vpop.f32.mrf.mxu0
      %v1864 = vadd.f32 0.0, %v1863
      %1865 = vmatmul.bf16.gmra.mxu0 %v1808
      %v1866 = vpop.f32.mrf.mxu0
      %v1867 = vadd.f32 0.0, %v1866
      %v1868 = vpop.f32.mrf.mxu0
      %1869 = vmatmul.bf16.gmra.mxu0 %v1811
      %v1870 = vpop.f32.mrf.mxu0
      %v1871 = vadd.f32 0.0, %v1870
      %v1872 = vpop.f32.mrf.mxu0
      %v1873 = vadd.f32 0.0, %v1872
      %1874 = vmatmul.bf16.gmra.mxu0 %v1814
      %v1875 = vpop.f32.mrf.mxu0
      %v1876 = vpop.f32.mrf.mxu0
      %v1877 = vadd.f32 0.0, %v1876
      %1878 = vmatmul.bf16.gmra.mxu0 %v1817
      %v1879 = vpop.f32.mrf.mxu0
      %v1880 = vadd.f32 0.0, %v1879
      %v1881 = vpop.f32.mrf.mxu0
      %1882 = vdwg.mxu0
      %v1883 = vadd.f32 %v1740, %v1832
      %v1884 = vadd.f32 %v1741, %v1834
      %v1885 = vadd.f32 %v1742, %v1838
      %v1886 = vadd.f32 %v1743, %v1841
      %v1887 = vadd.f32 %v1744, %v1845
      %v1888 = vadd.f32 %v1745, %v1847
      %v1889 = vadd.f32 %v1746, %v1851
      %v1890 = vadd.f32 %v1747, %v1854
      %v1891 = vadd.f32 %v1748, %v1858
      %v1892 = vadd.f32 %v1749, %v1860
      %v1893 = vadd.f32 %v1750, %v1864
      %v1894 = vadd.f32 %v1751, %v1867
      %v1895 = vadd.f32 %v1752, %v1871
      %v1896 = vadd.f32 %v1753, %v1873
      %v1897 = vadd.f32 %v1754, %v1877
      %v1898 = vadd.f32 %v1755, %v1880
      %v1899 = vld [vmem:[%s2] sm:$0x1]
      %v1901 = vperm.slane %v1899, 0
      %v1903 = vadd.f32 %v1883, %v1901
      %v1904 = vadd.f32 %v1884, %v1901
      %v1905 = vadd.f32 %v1885, %v1901
      %v1906 = vadd.f32 %v1886, %v1901
      %v1907 = vadd.f32 %v1887, %v1901
      %v1908 = vadd.f32 %v1888, %v1901
      %v1909 = vadd.f32 %v1889, %v1901
      %v1910 = vadd.f32 %v1890, %v1901
      %v1911 = vadd.f32 %v1891, %v1901
      %v1912 = vadd.f32 %v1892, %v1901
      %v1913 = vadd.f32 %v1893, %v1901
      %v1914 = vadd.f32 %v1894, %v1901
      %v1915 = vadd.f32 %v1895, %v1901
      %v1916 = vadd.f32 %v1896, %v1901
      %v1917 = vadd.f32 %v1897, %v1901
      %v1918 = vadd.f32 %v1898, %v1901
      %vm1919 = vcmp.gt.f32.partialorder %v1903, 0.0
      %vm1920 = vcmp.gt.f32.partialorder %v1904, 0.0
      %vm1921 = vcmp.gt.f32.partialorder %v1905, 0.0
      %vm1922 = vcmp.gt.f32.partialorder %v1906, 0.0
      %vm1923 = vcmp.gt.f32.partialorder %v1907, 0.0
      %vm1924 = vcmp.gt.f32.partialorder %v1908, 0.0
      %vm1925 = vcmp.gt.f32.partialorder %v1909, 0.0
      %vm1926 = vcmp.gt.f32.partialorder %v1910, 0.0
      %vm1927 = vcmp.gt.f32.partialorder %v1911, 0.0
      %vm1928 = vcmp.gt.f32.partialorder %v1912, 0.0
      %vm1929 = vcmp.gt.f32.partialorder %v1913, 0.0
      %vm1930 = vcmp.gt.f32.partialorder %v1914, 0.0
      %vm1931 = vcmp.gt.f32.partialorder %v1915, 0.0
      %vm1932 = vcmp.gt.f32.partialorder %v1916, 0.0
      %vm1933 = vcmp.gt.f32.partialorder %v1917, 0.0
      %vm1934 = vcmp.gt.f32.partialorder %v1918, 0.0
      %v1935 = vmul.f32 %v1903, 0.1
      %v1936 = vmul.f32 %v1904, 0.1
      %v1937 = vmul.f32 %v1905, 0.1
      %v1938 = vmul.f32 %v1906, 0.1
      %v1939 = vmul.f32 %v1907, 0.1
      %v1940 = vmul.f32 %v1908, 0.1
      %v1941 = vmul.f32 %v1909, 0.1
      %v1942 = vmul.f32 %v1910, 0.1
      %v1943 = vmul.f32 %v1911, 0.1
      %v1944 = vmul.f32 %v1912, 0.1
      %v1945 = vmul.f32 %v1913, 0.1
      %v1946 = vmul.f32 %v1914, 0.1
      %v1947 = vmul.f32 %v1915, 0.1
      %v1948 = vmul.f32 %v1916, 0.1
      %v1949 = vmul.f32 %v1917, 0.1
      %v1950 = vmul.f32 %v1918, 0.1
      %v1951 = vsel %vm1919, %v1903, %v1935
      %v1952 = vsel %vm1920, %v1904, %v1936
      %v1953 = vsel %vm1921, %v1905, %v1937
      %v1954 = vsel %vm1922, %v1906, %v1938
      %v1955 = vsel %vm1923, %v1907, %v1939
      %v1956 = vsel %vm1924, %v1908, %v1940
      %v1957 = vsel %vm1925, %v1909, %v1941
      %v1958 = vsel %vm1926, %v1910, %v1942
      %v1959 = vsel %vm1927, %v1911, %v1943
      %v1960 = vsel %vm1928, %v1912, %v1944
      %v1961 = vsel %vm1929, %v1913, %v1945
      %v1962 = vsel %vm1930, %v1914, %v1946
      %v1963 = vsel %vm1931, %v1915, %v1947
      %v1964 = vsel %vm1932, %v1916, %v1948
      %v1965 = vsel %vm1933, %v1917, %v1949
      %v1966 = vsel %vm1934, %v1918, %v1950
      %v1967 = vpack.c.bf16 %v1952, %v1951
      %v1968 = vpack.c.bf16 %v1954, %v1953
      %v1969 = vpack.c.bf16 %v1956, %v1955
      %v1970 = vpack.c.bf16 %v1958, %v1957
      %v1971 = vpack.c.bf16 %v1960, %v1959
      %v1972 = vpack.c.bf16 %v1962, %v1961
      %v1973 = vpack.c.bf16 %v1964, %v1963
      %v1974 = vpack.c.bf16 %v1966, %v1965
      %v1975 = vld [vmem:[%s3] sm:$0xf]
      %v1976 = vld [vmem:[%s4] sm:$0x1]
      %v1978 = vperm.slane %v1976, 0
      %vm1980 = vcmask 64512
      %v1982 = vsel %vm1980, %v1967, 0
      %v1985 = vsel %vm1980, %v1968, 0
      %v1988 = vsel %vm1980, %v1969, 0
      %v1991 = vsel %vm1980, %v1970, 0
      %v1994 = vsel %vm1980, %v1971, 0
      %v1997 = vsel %vm1980, %v1972, 0
      %v2000 = vsel %vm1980, %v1973, 0
      %v2003 = vsel %vm1980, %v1974, 0
      %vm2005 = vcmask 1043456
      %v2007 = vsel %vm2005, %v1975, 0
      %2009 = vmatpush.bf16.msra.mxu0 0
      %2010 = vmatpush.bf16.msra.mxu0 0
      %2011 = vmatpush.bf16.msra.mxu0 0
      %2012 = vmatpush.bf16.msra.mxu0 0
      %2013 = vmatpush.bf16.msra.mxu0 0
      %2014 = vmatpush.bf16.msra.mxu0 0
      %2015 = vmatpush.bf16.msra.mxu0 0
      %2016 = vmatpush.bf16.msra.mxu0 %v2007
      %2017 = vmatmul.bf16.gmra.mxu0 %v1982
      %v2018 = vpop.f32.mrf.mxu0
      %v2019 = vadd.f32 %v1978, %v2018
      %v2020 = vpop.f32.mrf.mxu0
      %v2021 = vadd.f32 %v1978, %v2020
      %2022 = vmatmul.bf16.gmra.mxu0 %v1985
      %v2023 = vpop.f32.mrf.mxu0
      %v2024 = vadd.f32 %v1978, %v2023
      %v2025 = vpop.f32.mrf.mxu0
      %v2026 = vadd.f32 %v1978, %v2025
      %2027 = vmatmul.bf16.gmra.mxu0 %v1988
      %v2028 = vpop.f32.mrf.mxu0
      %v2029 = vadd.f32 %v1978, %v2028
      %v2030 = vpop.f32.mrf.mxu0
      %v2031 = vadd.f32 %v1978, %v2030
      %2032 = vmatmul.bf16.gmra.mxu0 %v1991
      %v2033 = vpop.f32.mrf.mxu0
      %v2034 = vadd.f32 %v1978, %v2033
      %v2035 = vpop.f32.mrf.mxu0
      %v2036 = vadd.f32 %v1978, %v2035
      %2037 = vmatmul.bf16.gmra.mxu0 %v1994
      %v2038 = vpop.f32.mrf.mxu0
      %v2039 = vadd.f32 %v1978, %v2038
      %v2040 = vpop.f32.mrf.mxu0
      %v2041 = vadd.f32 %v1978, %v2040
      %2042 = vmatmul.bf16.gmra.mxu0 %v1997
      %v2043 = vpop.f32.mrf.mxu0
      %v2044 = vadd.f32 %v1978, %v2043
      %v2045 = vpop.f32.mrf.mxu0
      %v2046 = vadd.f32 %v1978, %v2045
      %2047 = vmatmul.bf16.gmra.mxu0 %v2000
      %v2048 = vpop.f32.mrf.mxu0
      %v2049 = vadd.f32 %v1978, %v2048
      %v2050 = vpop.f32.mrf.mxu0
      %v2051 = vadd.f32 %v1978, %v2050
      %2052 = vmatmul.bf16.gmra.mxu0 %v2003
      %v2053 = vpop.f32.mrf.mxu0
      %v2054 = vadd.f32 %v1978, %v2053
      %v2055 = vpop.f32.mrf.mxu0
      %v2056 = vadd.f32 %v1978, %v2055
      %2057 = vdwg.mxu0
      %2058 = vst [vmem:[%s248] sm:$0xff] %v2019
      %2059 = vst [vmem:[%s248 + $0x8] sm:$0xff] %v2021
      %2060 = vst [vmem:[%s248 + $0x10] sm:$0xff] %v2024
      %2061 = vst [vmem:[%s248 + $0x18] sm:$0xff] %v2026
      %2062 = vst [vmem:[%s248 + $0x20] sm:$0xff] %v2029
      %2063 = vst [vmem:[%s248 + $0x28] sm:$0xff] %v2031
      %2064 = vst [vmem:[%s248 + $0x30] sm:$0xff] %v2034
      %2065 = vst [vmem:[%s248 + $0x38] sm:$0xff] %v2036
      %2066 = vst [vmem:[%s248 + $0x40] sm:$0xff] %v2039
      %2067 = vst [vmem:[%s248 + $0x48] sm:$0xff] %v2041
      %2068 = vst [vmem:[%s248 + $0x50] sm:$0xff] %v2044
      %2069 = vst [vmem:[%s248 + $0x58] sm:$0xff] %v2046
      %2070 = vst [vmem:[%s248 + $0x60] sm:$0xff] %v2049
      %2071 = vst [vmem:[%s248 + $0x68] sm:$0xff] %v2051
      %2072 = vst [vmem:[%s248 + $0x70] sm:$0xff] %v2054
      %2073 = vst [vmem:[%s248 + $0x78] sm:$0xff] %v2056
      %s2074 = smul.u32 8, %s21
      %p2075 = scmp.lt.s32.totalorder %s20, 1
      %s2076 = scalar_select %p2075, %s20, 1
      %p2077 = scmp.lt.s32.totalorder %s2074, 15
      %s2078 = scalar_select %p2077, %s2074, 15
      %s2079 = smul.addr %s2078, 2
      %s2080 = smul.addr %s2076, 32
      %s2081 = sadd.s32 %s2079, %s2080
      %s2082 = smul.addr %s2081, 8
      %s2083 = scalar_lea.vmem %s5, %s2082
      // Predicated region
      $region41: #{scale_prediction.1} parent=39 // pred_check
        %p2084 = pneg %p158
      $region42: #{scale_prediction.1} parent=39 // pred_check_branch
        %2086 = sbr.rel (%p2084) target = $region44
      $region43: #{scale_prediction.1} parent=39 // pred_region
        %s2087 = smul.u32 8, %s21
      $region44: #{scale_prediction.1} parent=39 // pred_fallthru
        _
    $region40: #{scale_prediction.1} parent=5 // pred_fallthru
      _
    %p2088 = scmp.le.s32.totalorder 2, %s11
    // Predicated region
    $region45: #{scale_prediction.1} parent=5 // pred_check
      %p2089 = pneg %p2088
    $region46: #{scale_prediction.1} parent=5 // pred_check_branch
      %2091 = sbr.rel (%p2089) target = $region48
    $region47: #{scale_prediction.1} parent=5 // pred_region
      %s2092 = ssub.s32 %s11, 2
      // Predicated region
      $region49: #{scale_prediction.1} parent=47 // pred_check
        %p2093 = pneg %p164
      $region50: #{scale_prediction.1} parent=47 // pred_check_branch
        %2095 = sbr.rel (%p2093) target = $region52
      $region51: #{scale_prediction.1} parent=47 // pred_region
        %s2096 = smul.u32 8, %s23
        %p2097 = scmp.lt.s32.totalorder %s22, 1
        %s2098 = scalar_select %p2097, %s22, 1
        %p2099 = scmp.lt.s32.totalorder %s2096, 15
        %s2100 = scalar_select %p2099, %s2096, 15
        %s2101 = smul.addr %s2100, 2
        %s2102 = smul.addr %s2098, 32
        %s2103 = sadd.s32 %s2101, %s2102
        %s2104 = smul.addr %s2103, 8
        %s2105 = scalar_lea.vmem %s5, %s2104
      $region52: #{scale_prediction.1} parent=47 // pred_fallthru
        _
    $region48: #{scale_prediction.1} parent=5 // pred_fallthru
      _
  $region6: #{scale_prediction.1} parent=0 // loop_footer
    %s15 = sadd.s32 1, %s11
  $region7: #{scale_prediction.1} parent=0 // loop_footer_branch
    %10 = sbr.rel target = $region3
  $region8: #{scale_prediction.1} parent=0 // loop_exit
    _

</llo_original>
